<compile_context>
chip_gen: v5e
topology: v5e:2x2
jax: 0.10.0
libtpu: 0.0.40
codegen_flags: <defaults>
</compile_context>

<pallas_src>
import math
import jax
import jax.numpy as jnp
from jax.experimental import pallas as pl
from jax.experimental.pallas import tpu as pltpu

# ----------------------------- small DistilBERT config -----------------------------
VOCAB = 50        # vocab size (synthetic)
VPAD = 64         # vocab padded for the in-kernel one-hot gather matmul
MAXPOS = 16       # max position embeddings
B = 2             # batch
S = 8             # sequence length
M = B * S         # flattened rows fed to every matmul
H = 64            # hidden size
NH = 2            # attention heads
DH = H // NH      # head dim
HPAD = 128        # per-Q/K/V lane band in the packed QKV weight (tile-aligned slices)
FF = 4 * H        # FFN inner dim
LAYERS = 2        # transformer layers
NUM_LABELS = 10   # synthetic stand-in for len(unique_courses)
LPAD = 128        # classifier lane padding (lane-dense output stores)
LN_EPS = 1e-12
NEG = -1e9


# ----------------------------- fused Pallas kernel -----------------------------
def fused_bert_kernel(ids_ref, mask_ref, wemb_ref, pos_ref, blockb_ref,
                      embg_ref, embb_ref,
                      wqkv_ref, bqkv_ref, wo_ref, bo_ref,
                      ln1g_ref, ln1b_ref, w1_ref, b1_ref,
                      w2_ref, b2_ref, ln2g_ref, ln2b_ref,
                      clsw_ref, clsb_ref, out_ref):
    """Whole forward (embedding lookup -> 2 encoder layers -> classifier) in one invocation.

    ids_ref    : (M, 1)       int32 token ids (flattened batch)
    mask_ref   : (1, M)       int32 attention mask (flattened batch, key axis)
    wemb_ref   : (VPAD, H)    word embeddings (vocab zero-padded to VPAD rows)
    pos_ref    : (M, H)       position embeddings, pre-tiled over the batch
    blockb_ref : (M, M)       static cross-batch block bias (0 / -1e9)
    per-layer weights are stacked with a leading LAYERS axis
    out_ref    : (B, LPAD)    lane-padded logits
    """
    f32 = jnp.float32

    def ln(v, g, b):
        mu = jnp.mean(v, axis=-1, keepdims=True)
        var = jnp.mean((v - mu) ** 2, axis=-1, keepdims=True)
        return (v - mu) * jax.lax.rsqrt(var + LN_EPS) * g + b

    def gelu(v):  # exact erf-GELU (DistilBERT)
        return 0.5 * v * (1.0 + jax.lax.erf(v * (1.0 / math.sqrt(2.0))))

    # ---- embedding lookup as a one-hot matmul on the (otherwise idle) MXU ----
    ids = ids_ref[...]                                                          # (M, 1)
    onehot = (ids == jax.lax.broadcasted_iota(jnp.int32, (M, VPAD), 1)).astype(f32)
    x = jnp.dot(onehot, wemb_ref[...], preferred_element_type=f32)              # (M, H)
    x = x + pos_ref[...]
    x = ln(x, embg_ref[...], embb_ref[...])                                     # embedding LayerNorm

    # ---- attention bias, hoisted out of the layer/head loops ----
    key_bias = (1.0 - mask_ref[...].astype(f32)) * NEG                          # (1, M)
    bias = blockb_ref[...] + key_bias                                           # (M, M)

    # per-head lane masks over the padded hidden band (hoisted; JAX doesn't CSE broadcasts)
    lane = jax.lax.broadcasted_iota(jnp.int32, (1, HPAD), 1)
    head_masks = [((lane >= h * DH) & (lane < (h + 1) * DH)).astype(f32) for h in range(NH)]

    for l in range(LAYERS):                                                     # static unroll
        # ---- multi-head self attention ----
        # Packed QKV: Q/K/V each occupy their own 128-lane tile; 1/sqrt(DH) folded into Q at init.
        qkv = jnp.dot(x, wqkv_ref[l], preferred_element_type=f32) + bqkv_ref[l]  # (M, 3*HPAD)
        q = qkv[:, 0 * HPAD:1 * HPAD]                                            # tile-aligned slices
        k = qkv[:, 1 * HPAD:2 * HPAD]
        v = qkv[:, 2 * HPAD:3 * HPAD]

        ctx = jnp.zeros((M, HPAD), f32)
        for h in range(NH):                                                      # static unroll
            m = head_masks[h]
            # Masking q selects this head's lanes -> one flat (M, HPAD) x (HPAD, M) score matmul.
            s = jax.lax.dot_general(q * m, k, (((1,), (1,)), ((), ())),
                                    preferred_element_type=f32) + bias           # (M, M)
            s = s - jnp.max(s, axis=-1, keepdims=True)
            p = jnp.exp(s)
            p = p * pl.reciprocal(jnp.sum(p, axis=-1, keepdims=True), approx=True)
            # Masking v drops this head's context straight into its lanes of the concat context.
            ctx = ctx + jnp.dot(p, v * m, preferred_element_type=f32)            # (M, HPAD)

        attn = jnp.dot(ctx, wo_ref[l], preferred_element_type=f32) + bo_ref[l]   # (M, H)
        h1 = ln(attn + x, ln1g_ref[l], ln1b_ref[l])                              # sa_layer_norm

        # ---- feed forward ----
        ff = jnp.dot(h1, w1_ref[l], preferred_element_type=f32) + b1_ref[l]
        ff = gelu(ff)
        ff = jnp.dot(ff, w2_ref[l], preferred_element_type=f32) + b2_ref[l]
        x = ln(ff + h1, ln2g_ref[l], ln2b_ref[l])                                # output_layer_norm

    # ---- classifier on all M rows (lane-dense), then select CLS rows via a tiny MXU matmul ----
    logits_all = jnp.dot(x, clsw_ref[...], preferred_element_type=f32) + clsb_ref[...]  # (M, LPAD)
    row = jax.lax.broadcasted_iota(jnp.int32, (B, M), 0)
    col = jax.lax.broadcasted_iota(jnp.int32, (B, M), 1)
    sel = (col == row * S).astype(f32)                                           # picks rows 0, S, ...
    out_ref[...] = jnp.dot(sel, logits_all, preferred_element_type=f32).astype(out_ref.dtype)


# ----------------------------- wrapper -----------------------------
def multilabel_bert_forward(params, input_ids, attention_mask):
    # No XLA compute in the wrapper: only metadata reshapes of the tiny int inputs.
    ids = input_ids.reshape(M, 1).astype(jnp.int32)
    mask = attention_mask.reshape(1, M).astype(jnp.int32)

    kernel_args = (
        ids, mask,
        params["wemb_pad"], params["pos_tiled"], params["block_bias"],
        params["emb_ln_g"], params["emb_ln_b"],
        params["wqkv_pad"], params["bqkv_pad"], params["wo_pad"], params["bo"],
        params["ln1g"], params["ln1b"], params["w1"], params["b1"],
        params["w2"], params["b2"], params["ln2g"], params["ln2b"],
        params["cls_w_pad"], params["cls_b_pad"],
    )
    vmem = pl.BlockSpec(memory_space=pltpu.MemorySpace.VMEM)
    logits_pad = pl.pallas_call(
        fused_bert_kernel,
        out_shape=jax.ShapeDtypeStruct((B, LPAD), jnp.float32),
        in_specs=[vmem] * len(kernel_args),
        out_specs=vmem,
    )(*kernel_args)
    return logits_pad[:, :NUM_LABELS]


# ----------------------------- parameters -----------------------------
def init_params(key):
    def nrm(k, shape):
        return jax.random.normal(k, shape, jnp.float32) * 0.02

    ks = iter(jax.random.split(key, 24))
    p = {
        "word_emb": nrm(next(ks), (VOCAB, H)),
        "pos_emb": nrm(next(ks), (MAXPOS, H)),
        "emb_ln_g": 1.0 + nrm(next(ks), (1, H)),
        "emb_ln_b": nrm(next(ks), (1, H)),
        "wq": nrm(next(ks), (LAYERS, H, H)), "bq": nrm(next(ks), (LAYERS, 1, H)),
        "wk": nrm(next(ks), (LAYERS, H, H)), "bk": nrm(next(ks), (LAYERS, 1, H)),
        "wv": nrm(next(ks), (LAYERS, H, H)), "bv": nrm(next(ks), (LAYERS, 1, H)),
        "wo": nrm(next(ks), (LAYERS, H, H)), "bo": nrm(next(ks), (LAYERS, 1, H)),
        "ln1g": 1.0 + nrm(next(ks), (LAYERS, 1, H)), "ln1b": nrm(next(ks), (LAYERS, 1, H)),
        "w1": nrm(next(ks), (LAYERS, H, FF)), "b1": nrm(next(ks), (LAYERS, 1, FF)),
        "w2": nrm(next(ks), (LAYERS, FF, H)), "b2": nrm(next(ks), (LAYERS, 1, H)),
        "ln2g": 1.0 + nrm(next(ks), (LAYERS, 1, H)), "ln2b": nrm(next(ks), (LAYERS, 1, H)),
        "cls_w": nrm(next(ks), (H, NUM_LABELS)),
        "cls_b": nrm(next(ks), (1, NUM_LABELS)),
    }

    # ---- one-time host-side packing / padding for the kernel ----
    scale = 1.0 / math.sqrt(DH)

    # Packed QKV with each of Q/K/V in its own 128-lane band; 1/sqrt(DH) folded into the Q band.
    wqkv = jnp.zeros((LAYERS, H, 3 * HPAD), jnp.float32)
    wqkv = wqkv.at[:, :, 0 * HPAD:0 * HPAD + H].set(p["wq"] * scale)
    wqkv = wqkv.at[:, :, 1 * HPAD:1 * HPAD + H].set(p["wk"])
    wqkv = wqkv.at[:, :, 2 * HPAD:2 * HPAD + H].set(p["wv"])
    bqkv = jnp.zeros((LAYERS, 1, 3 * HPAD), jnp.float32)
    bqkv = bqkv.at[:, :, 0 * HPAD:0 * HPAD + H].set(p["bq"] * scale)
    bqkv = bqkv.at[:, :, 1 * HPAD:1 * HPAD + H].set(p["bk"])
    bqkv = bqkv.at[:, :, 2 * HPAD:2 * HPAD + H].set(p["bv"])
    p["wqkv_pad"] = wqkv
    p["bqkv_pad"] = bqkv

    # Output projection row-padded so the 128-lane context hits it without a sub-tile slice.
    p["wo_pad"] = jnp.zeros((LAYERS, HPAD, H), jnp.float32).at[:, :H, :].set(p["wo"])

    # Word embeddings zero-padded to VPAD rows for the one-hot gather matmul.
    p["wemb_pad"] = jnp.zeros((VPAD, H), jnp.float32).at[:VOCAB, :].set(p["word_emb"])
    # Position embeddings pre-tiled over the (static) batch.
    p["pos_tiled"] = jnp.tile(p["pos_emb"][:S], (B, 1))
    # Static cross-batch block bias for the flattened (M, M) attention scores.
    ridx = jnp.arange(M) // S
    p["block_bias"] = jnp.where(ridx[:, None] == ridx[None, :], 0.0, NEG).astype(jnp.float32)

    # Lane-padded classifier (kernel stores a lane-dense (B, 128) block; real logits sliced outside).
    p["cls_w_pad"] = jnp.zeros((H, LPAD), jnp.float32).at[:, :NUM_LABELS].set(p["cls_w"])
    p["cls_b_pad"] = jnp.zeros((1, LPAD), jnp.float32).at[:, :NUM_LABELS].set(p["cls_b"])
    return p


# ----------------------------- pure-JAX reference (correctness check) -----------------------------
def reference_forward(params, input_ids, attention_mask):
    hp = jax.lax.Precision.HIGHEST

    def ln(v, g, b):
        mu = jnp.mean(v, axis=-1, keepdims=True)
        var = jnp.mean((v - mu) ** 2, axis=-1, keepdims=True)
        return (v - mu) * jax.lax.rsqrt(var + LN_EPS) * g + b

    we = jnp.take(params["word_emb"], input_ids, axis=0)
    x = we + params["pos_emb"][:S][None, :, :]
    x = ln(x, params["emb_ln_g"], params["emb_ln_b"])
    bias = ((1.0 - attention_mask.astype(jnp.float32)) * NEG)[:, None, None, :]   # (B,1,1,S)

    for l in range(LAYERS):
        q = jnp.einsum('bsh,hd->bsd', x, params["wq"][l], precision=hp) + params["bq"][l]
        k = jnp.einsum('bsh,hd->bsd', x, params["wk"][l], precision=hp) + params["bk"][l]
        v = jnp.einsum('bsh,hd->bsd', x, params["wv"][l], precision=hp) + params["bv"][l]
        q = q.reshape(B, S, NH, DH).transpose(0, 2, 1, 3)
        k = k.reshape(B, S, NH, DH).transpose(0, 2, 1, 3)
        v = v.reshape(B, S, NH, DH).transpose(0, 2, 1, 3)
        s = jnp.einsum('bhqd,bhkd->bhqk', q, k, precision=hp) / math.sqrt(DH) + bias
        pr = jax.nn.softmax(s, axis=-1)
        ctx = jnp.einsum('bhqk,bhkd->bhqd', pr, v, precision=hp)
        ctx = ctx.transpose(0, 2, 1, 3).reshape(B, S, H)
        attn = jnp.einsum('bsh,hd->bsd', ctx, params["wo"][l], precision=hp) + params["bo"][l]
        h1 = ln(attn + x, params["ln1g"][l], params["ln1b"][l])
        ff = jnp.einsum('bsh,hf->bsf', h1, params["w1"][l], precision=hp) + params["b1"][l]
        ff = jax.nn.gelu(ff, approximate=False)          # exact erf-GELU, matching the kernel
        ff = jnp.einsum('bsf,fh->bsh', ff, params["w2"][l], precision=hp) + params["b2"][l]
        x = ln(ff + h1, params["ln2g"][l], params["ln2b"][l])

    pooled = x[:, 0, :]
    return jnp.dot(pooled, params["cls_w"], precision=hp) + params["cls_b"]


# ----------------------------- main -----------------------------
if __name__ == "__main__":
    root = jax.random.PRNGKey(0)
    pkey, ikey = jax.random.split(root)

    params = init_params(pkey)
    input_ids = jax.random.randint(ikey, (B, S), 0, VOCAB, dtype=jnp.int32)
    attention_mask = jnp.array(
        [[1, 1, 1, 1, 1, 1, 1, 1],
         [1, 1, 1, 1, 1, 1, 0, 0]], dtype=jnp.int32)              # second example padded

    fwd = jax.jit(multilabel_bert_forward)
    logits = jax.block_until_ready(fwd(params, input_ids, attention_mask))

    assert logits.shape == (B, NUM_LABELS)
    assert bool(jnp.all(jnp.isfinite(logits)))

    ref = reference_forward(params, input_ids, attention_mask)
    max_err = float(jnp.max(jnp.abs(logits - ref)))
    assert max_err < 2e-2, f"kernel/reference mismatch: max abs err = {max_err}"

    print("KERNEL_OK")
</pallas_src>

<mosaic_0001>
module attributes {stable_mosaic.version = 11 : i64} {
  func.func @fused_bert_kernel(%arg0: memref<16x1xi32, #tpu.memory_space<vmem>>, %arg1: memref<1x16xi32, #tpu.memory_space<vmem>>, %arg2: memref<64x64xf32, #tpu.memory_space<vmem>>, %arg3: memref<16x64xf32, #tpu.memory_space<vmem>>, %arg4: memref<16x16xf32, #tpu.memory_space<vmem>>, %arg5: memref<1x64xf32, #tpu.memory_space<vmem>>, %arg6: memref<1x64xf32, #tpu.memory_space<vmem>>, %arg7: memref<2x64x384xf32, #tpu.memory_space<vmem>>, %arg8: memref<2x1x384xf32, #tpu.memory_space<vmem>>, %arg9: memref<2x128x64xf32, #tpu.memory_space<vmem>>, %arg10: memref<2x1x64xf32, #tpu.memory_space<vmem>>, %arg11: memref<2x1x64xf32, #tpu.memory_space<vmem>>, %arg12: memref<2x1x64xf32, #tpu.memory_space<vmem>>, %arg13: memref<2x64x256xf32, #tpu.memory_space<vmem>>, %arg14: memref<2x1x256xf32, #tpu.memory_space<vmem>>, %arg15: memref<2x256x64xf32, #tpu.memory_space<vmem>>, %arg16: memref<2x1x64xf32, #tpu.memory_space<vmem>>, %arg17: memref<2x1x64xf32, #tpu.memory_space<vmem>>, %arg18: memref<2x1x64xf32, #tpu.memory_space<vmem>>, %arg19: memref<64x128xf32, #tpu.memory_space<vmem>>, %arg20: memref<1x128xf32, #tpu.memory_space<vmem>>, %arg21: memref<2x128xf32, #tpu.memory_space<vmem>>) attributes {dimension_semantics = [], scalar_prefetch = 0 : i64, scratch_operands = 0 : i64, tpu.core_type = #tpu.core_type<tc>} {
    %c0 = arith.constant 0 : index
    %c0_0 = arith.constant 0 : index
    %0 = vector.load %arg0[%c0, %c0_0] : memref<16x1xi32, #tpu.memory_space<vmem>>, vector<16x1xi32>
    %1 = tpu.iota {dimensions = array<i32: 1>} : vector<16x64xi32>
    %2 = vector.broadcast %0 : vector<16x1xi32> to vector<16x64xi32>
    %3 = arith.cmpi eq, %2, %1 : vector<16x64xi32>
    %4 = arith.extui %3 : vector<16x64xi1> to vector<16x64xi32>
    %5 = arith.sitofp %4 : vector<16x64xi32> to vector<16x64xf32>
    %c0_1 = arith.constant 0 : index
    %c0_2 = arith.constant 0 : index
    %6 = vector.load %arg2[%c0_1, %c0_2] : memref<64x64xf32, #tpu.memory_space<vmem>>, vector<64x64xf32>
    %cst = arith.constant dense<0.000000e+00> : vector<16x64xf32>
    %7 = tpu.matmul %5, %6, %cst {dimension_numbers = #tpu.dot_dimension_numbers<[1], [0], [0], [1], [0, 0, 1, 1], [], []>} : vector<16x64xf32>, vector<64x64xf32>, vector<16x64xf32> -> vector<16x64xf32>
    %c0_3 = arith.constant 0 : index
    %c0_4 = arith.constant 0 : index
    %8 = vector.load %arg3[%c0_3, %c0_4] : memref<16x64xf32, #tpu.memory_space<vmem>>, vector<16x64xf32>
    %9 = arith.addf %7, %8 : vector<16x64xf32>
    %c0_5 = arith.constant 0 : index
    %c0_6 = arith.constant 0 : index
    %10 = vector.load %arg5[%c0_5, %c0_6] : memref<1x64xf32, #tpu.memory_space<vmem>>, vector<1x64xf32>
    %c0_7 = arith.constant 0 : index
    %c0_8 = arith.constant 0 : index
    %11 = vector.load %arg6[%c0_7, %c0_8] : memref<1x64xf32, #tpu.memory_space<vmem>>, vector<1x64xf32>
    %cst_9 = arith.constant dense<0.000000e+00> : vector<16xf32>
    %12 = vector.multi_reduction <add>, %9, %cst_9 [1] : vector<16x64xf32> to vector<16xf32>
    %13 = vector.shape_cast %12 : vector<16xf32> to vector<16x1xf32>
    %cst_10 = arith.constant 6.400000e+01 : f32
    %14 = vector.broadcast %cst_10 : f32 to vector<16x1xf32>
    %15 = arith.divf %13, %14 : vector<16x1xf32>
    %16 = vector.broadcast %15 : vector<16x1xf32> to vector<16x64xf32>
    %17 = arith.subf %9, %16 : vector<16x64xf32>
    %18 = arith.mulf %17, %17 : vector<16x64xf32>
    %cst_11 = arith.constant dense<0.000000e+00> : vector<16xf32>
    %19 = vector.multi_reduction <add>, %18, %cst_11 [1] : vector<16x64xf32> to vector<16xf32>
    %20 = vector.shape_cast %19 : vector<16xf32> to vector<16x1xf32>
    %cst_12 = arith.constant 6.400000e+01 : f32
    %21 = vector.broadcast %cst_12 : f32 to vector<16x1xf32>
    %22 = arith.divf %20, %21 : vector<16x1xf32>
    %23 = vector.broadcast %15 : vector<16x1xf32> to vector<16x64xf32>
    %24 = arith.subf %9, %23 : vector<16x64xf32>
    %cst_13 = arith.constant 9.99999996E-13 : f32
    %25 = vector.broadcast %cst_13 : f32 to vector<16x1xf32>
    %26 = arith.addf %22, %25 : vector<16x1xf32>
    %27 = math.rsqrt %26 : vector<16x1xf32>
    %28 = vector.broadcast %27 : vector<16x1xf32> to vector<16x64xf32>
    %29 = arith.mulf %24, %28 : vector<16x64xf32>
    %30 = vector.broadcast %10 : vector<1x64xf32> to vector<16x64xf32>
    %31 = arith.mulf %29, %30 : vector<16x64xf32>
    %32 = vector.broadcast %11 : vector<1x64xf32> to vector<16x64xf32>
    %33 = arith.addf %31, %32 : vector<16x64xf32>
    %c0_14 = arith.constant 0 : index
    %c0_15 = arith.constant 0 : index
    %34 = vector.load %arg1[%c0_14, %c0_15] : memref<1x16xi32, #tpu.memory_space<vmem>>, vector<1x16xi32>
    %35 = arith.sitofp %34 : vector<1x16xi32> to vector<1x16xf32>
    %cst_16 = arith.constant 1.000000e+00 : f32
    %36 = vector.broadcast %cst_16 : f32 to vector<1x16xf32>
    %37 = arith.subf %36, %35 : vector<1x16xf32>
    %cst_17 = arith.constant -1.000000e+09 : f32
    %38 = vector.broadcast %cst_17 : f32 to vector<1x16xf32>
    %39 = arith.mulf %37, %38 : vector<1x16xf32>
    %c0_18 = arith.constant 0 : index
    %c0_19 = arith.constant 0 : index
    %40 = vector.load %arg4[%c0_18, %c0_19] : memref<16x16xf32, #tpu.memory_space<vmem>>, vector<16x16xf32>
    %41 = vector.broadcast %39 : vector<1x16xf32> to vector<16x16xf32>
    %42 = arith.addf %40, %41 : vector<16x16xf32>
    %43 = tpu.iota {dimensions = array<i32: 1>} : vector<1x128xi32>
    %c0_i32 = arith.constant 0 : i32
    %44 = vector.broadcast %c0_i32 : i32 to vector<1x128xi32>
    %45 = arith.cmpi sge, %43, %44 : vector<1x128xi32>
    %c32_i32 = arith.constant 32 : i32
    %46 = vector.broadcast %c32_i32 : i32 to vector<1x128xi32>
    %47 = arith.cmpi slt, %43, %46 : vector<1x128xi32>
    %48 = arith.andi %45, %47 : vector<1x128xi1>
    %49 = arith.extui %48 : vector<1x128xi1> to vector<1x128xi32>
    %50 = arith.sitofp %49 : vector<1x128xi32> to vector<1x128xf32>
    %c32_i32_20 = arith.constant 32 : i32
    %51 = vector.broadcast %c32_i32_20 : i32 to vector<1x128xi32>
    %52 = arith.cmpi sge, %43, %51 : vector<1x128xi32>
    %c64_i32 = arith.constant 64 : i32
    %53 = vector.broadcast %c64_i32 : i32 to vector<1x128xi32>
    %54 = arith.cmpi slt, %43, %53 : vector<1x128xi32>
    %55 = arith.andi %52, %54 : vector<1x128xi1>
    %56 = arith.extui %55 : vector<1x128xi1> to vector<1x128xi32>
    %57 = arith.sitofp %56 : vector<1x128xi32> to vector<1x128xf32>
    %c0_21 = arith.constant 0 : index
    %c0_22 = arith.constant 0 : index
    %c0_23 = arith.constant 0 : index
    %58 = vector.load %arg7[%c0_21, %c0_22, %c0_23] : memref<2x64x384xf32, #tpu.memory_space<vmem>>, vector<1x64x384xf32>
    %59 = vector.shape_cast %58 : vector<1x64x384xf32> to vector<64x384xf32>
    %cst_24 = arith.constant dense<0.000000e+00> : vector<16x384xf32>
    %60 = tpu.matmul %33, %59, %cst_24 {dimension_numbers = #tpu.dot_dimension_numbers<[1], [0], [0], [1], [0, 0, 1, 1], [], []>} : vector<16x64xf32>, vector<64x384xf32>, vector<16x384xf32> -> vector<16x384xf32>
    %c0_25 = arith.constant 0 : index
    %c0_26 = arith.constant 0 : index
    %c0_27 = arith.constant 0 : index
    %61 = vector.load %arg8[%c0_25, %c0_26, %c0_27] : memref<2x1x384xf32, #tpu.memory_space<vmem>>, vector<1x1x384xf32>
    %62 = vector.shape_cast %61 : vector<1x1x384xf32> to vector<1x384xf32>
    %63 = vector.broadcast %62 : vector<1x384xf32> to vector<16x384xf32>
    %64 = arith.addf %60, %63 : vector<16x384xf32>
    %65 = vector.extract_strided_slice %64 {offsets = [0, 0], sizes = [16, 128], strides = [1, 1]} : vector<16x384xf32> to vector<16x128xf32>
    %66 = vector.extract_strided_slice %64 {offsets = [0, 128], sizes = [16, 128], strides = [1, 1]} : vector<16x384xf32> to vector<16x128xf32>
    %67 = vector.extract_strided_slice %64 {offsets = [0, 256], sizes = [16, 128], strides = [1, 1]} : vector<16x384xf32> to vector<16x128xf32>
    %cst_28 = arith.constant 0.000000e+00 : f32
    %68 = vector.broadcast %cst_28 : f32 to vector<16x128xf32>
    %69 = vector.broadcast %50 : vector<1x128xf32> to vector<16x128xf32>
    %70 = arith.mulf %65, %69 : vector<16x128xf32>
    %cst_29 = arith.constant dense<0.000000e+00> : vector<16x16xf32>
    %71 = tpu.matmul %70, %66, %cst_29 {dimension_numbers = #tpu.dot_dimension_numbers<[1], [1], [0], [0], [0, 0, 1, 0], [], []>} : vector<16x128xf32>, vector<16x128xf32>, vector<16x16xf32> -> vector<16x16xf32>
    %72 = arith.addf %71, %42 : vector<16x16xf32>
    %cst_30 = arith.constant dense<0xFF800000> : vector<16xf32>
    %73 = vector.multi_reduction <maximumf>, %72, %cst_30 [1] : vector<16x16xf32> to vector<16xf32>
    %74 = vector.shape_cast %73 : vector<16xf32> to vector<16x1xf32>
    %75 = vector.broadcast %74 : vector<16x1xf32> to vector<16x16xf32>
    %76 = arith.subf %72, %75 : vector<16x16xf32>
    %77 = math.exp %76 : vector<16x16xf32>
    %cst_31 = arith.constant dense<0.000000e+00> : vector<16xf32>
    %78 = vector.multi_reduction <add>, %77, %cst_31 [1] : vector<16x16xf32> to vector<16xf32>
    %79 = vector.shape_cast %78 : vector<16xf32> to vector<16x1xf32>
    %80 = tpu.reciprocal %79 {approx = true} : vector<16x1xf32> -> vector<16x1xf32>
    %81 = vector.broadcast %80 : vector<16x1xf32> to vector<16x16xf32>
    %82 = arith.mulf %77, %81 : vector<16x16xf32>
    %83 = vector.broadcast %50 : vector<1x128xf32> to vector<16x128xf32>
    %84 = arith.mulf %67, %83 : vector<16x128xf32>
    %cst_32 = arith.constant dense<0.000000e+00> : vector<16x128xf32>
    %85 = tpu.matmul %82, %84, %cst_32 {dimension_numbers = #tpu.dot_dimension_numbers<[1], [0], [0], [1], [0, 0, 1, 1], [], []>} : vector<16x16xf32>, vector<16x128xf32>, vector<16x128xf32> -> vector<16x128xf32>
    %86 = arith.addf %68, %85 : vector<16x128xf32>
    %87 = vector.broadcast %57 : vector<1x128xf32> to vector<16x128xf32>
    %88 = arith.mulf %65, %87 : vector<16x128xf32>
    %cst_33 = arith.constant dense<0.000000e+00> : vector<16x16xf32>
    %89 = tpu.matmul %88, %66, %cst_33 {dimension_numbers = #tpu.dot_dimension_numbers<[1], [1], [0], [0], [0, 0, 1, 0], [], []>} : vector<16x128xf32>, vector<16x128xf32>, vector<16x16xf32> -> vector<16x16xf32>
    %90 = arith.addf %89, %42 : vector<16x16xf32>
    %cst_34 = arith.constant dense<0xFF800000> : vector<16xf32>
    %91 = vector.multi_reduction <maximumf>, %90, %cst_34 [1] : vector<16x16xf32> to vector<16xf32>
    %92 = vector.shape_cast %91 : vector<16xf32> to vector<16x1xf32>
    %93 = vector.broadcast %92 : vector<16x1xf32> to vector<16x16xf32>
    %94 = arith.subf %90, %93 : vector<16x16xf32>
    %95 = math.exp %94 : vector<16x16xf32>
    %cst_35 = arith.constant dense<0.000000e+00> : vector<16xf32>
    %96 = vector.multi_reduction <add>, %95, %cst_35 [1] : vector<16x16xf32> to vector<16xf32>
    %97 = vector.shape_cast %96 : vector<16xf32> to vector<16x1xf32>
    %98 = tpu.reciprocal %97 {approx = true} : vector<16x1xf32> -> vector<16x1xf32>
    %99 = vector.broadcast %98 : vector<16x1xf32> to vector<16x16xf32>
    %100 = arith.mulf %95, %99 : vector<16x16xf32>
    %101 = vector.broadcast %57 : vector<1x128xf32> to vector<16x128xf32>
    %102 = arith.mulf %67, %101 : vector<16x128xf32>
    %cst_36 = arith.constant dense<0.000000e+00> : vector<16x128xf32>
    %103 = tpu.matmul %100, %102, %cst_36 {dimension_numbers = #tpu.dot_dimension_numbers<[1], [0], [0], [1], [0, 0, 1, 1], [], []>} : vector<16x16xf32>, vector<16x128xf32>, vector<16x128xf32> -> vector<16x128xf32>
    %104 = arith.addf %86, %103 : vector<16x128xf32>
    %c0_37 = arith.constant 0 : index
    %c0_38 = arith.constant 0 : index
    %c0_39 = arith.constant 0 : index
    %105 = vector.load %arg9[%c0_37, %c0_38, %c0_39] : memref<2x128x64xf32, #tpu.memory_space<vmem>>, vector<1x128x64xf32>
    %106 = vector.shape_cast %105 : vector<1x128x64xf32> to vector<128x64xf32>
    %cst_40 = arith.constant dense<0.000000e+00> : vector<16x64xf32>
    %107 = tpu.matmul %104, %106, %cst_40 {dimension_numbers = #tpu.dot_dimension_numbers<[1], [0], [0], [1], [0, 0, 1, 1], [], []>} : vector<16x128xf32>, vector<128x64xf32>, vector<16x64xf32> -> vector<16x64xf32>
    %c0_41 = arith.constant 0 : index
    %c0_42 = arith.constant 0 : index
    %c0_43 = arith.constant 0 : index
    %108 = vector.load %arg10[%c0_41, %c0_42, %c0_43] : memref<2x1x64xf32, #tpu.memory_space<vmem>>, vector<1x1x64xf32>
    %109 = vector.shape_cast %108 : vector<1x1x64xf32> to vector<1x64xf32>
    %110 = vector.broadcast %109 : vector<1x64xf32> to vector<16x64xf32>
    %111 = arith.addf %107, %110 : vector<16x64xf32>
    %112 = arith.addf %111, %33 : vector<16x64xf32>
    %c0_44 = arith.constant 0 : index
    %c0_45 = arith.constant 0 : index
    %c0_46 = arith.constant 0 : index
    %113 = vector.load %arg11[%c0_44, %c0_45, %c0_46] : memref<2x1x64xf32, #tpu.memory_space<vmem>>, vector<1x1x64xf32>
    %114 = vector.shape_cast %113 : vector<1x1x64xf32> to vector<1x64xf32>
    %c0_47 = arith.constant 0 : index
    %c0_48 = arith.constant 0 : index
    %c0_49 = arith.constant 0 : index
    %115 = vector.load %arg12[%c0_47, %c0_48, %c0_49] : memref<2x1x64xf32, #tpu.memory_space<vmem>>, vector<1x1x64xf32>
    %116 = vector.shape_cast %115 : vector<1x1x64xf32> to vector<1x64xf32>
    %cst_50 = arith.constant dense<0.000000e+00> : vector<16xf32>
    %117 = vector.multi_reduction <add>, %112, %cst_50 [1] : vector<16x64xf32> to vector<16xf32>
    %118 = vector.shape_cast %117 : vector<16xf32> to vector<16x1xf32>
    %cst_51 = arith.constant 6.400000e+01 : f32
    %119 = vector.broadcast %cst_51 : f32 to vector<16x1xf32>
    %120 = arith.divf %118, %119 : vector<16x1xf32>
    %121 = vector.broadcast %120 : vector<16x1xf32> to vector<16x64xf32>
    %122 = arith.subf %112, %121 : vector<16x64xf32>
    %123 = arith.mulf %122, %122 : vector<16x64xf32>
    %cst_52 = arith.constant dense<0.000000e+00> : vector<16xf32>
    %124 = vector.multi_reduction <add>, %123, %cst_52 [1] : vector<16x64xf32> to vector<16xf32>
    %125 = vector.shape_cast %124 : vector<16xf32> to vector<16x1xf32>
    %cst_53 = arith.constant 6.400000e+01 : f32
    %126 = vector.broadcast %cst_53 : f32 to vector<16x1xf32>
    %127 = arith.divf %125, %126 : vector<16x1xf32>
    %128 = vector.broadcast %120 : vector<16x1xf32> to vector<16x64xf32>
    %129 = arith.subf %112, %128 : vector<16x64xf32>
    %cst_54 = arith.constant 9.99999996E-13 : f32
    %130 = vector.broadcast %cst_54 : f32 to vector<16x1xf32>
    %131 = arith.addf %127, %130 : vector<16x1xf32>
    %132 = math.rsqrt %131 : vector<16x1xf32>
    %133 = vector.broadcast %132 : vector<16x1xf32> to vector<16x64xf32>
    %134 = arith.mulf %129, %133 : vector<16x64xf32>
    %135 = vector.broadcast %114 : vector<1x64xf32> to vector<16x64xf32>
    %136 = arith.mulf %134, %135 : vector<16x64xf32>
    %137 = vector.broadcast %116 : vector<1x64xf32> to vector<16x64xf32>
    %138 = arith.addf %136, %137 : vector<16x64xf32>
    %c0_55 = arith.constant 0 : index
    %c0_56 = arith.constant 0 : index
    %c0_57 = arith.constant 0 : index
    %139 = vector.load %arg13[%c0_55, %c0_56, %c0_57] : memref<2x64x256xf32, #tpu.memory_space<vmem>>, vector<1x64x256xf32>
    %140 = vector.shape_cast %139 : vector<1x64x256xf32> to vector<64x256xf32>
    %cst_58 = arith.constant dense<0.000000e+00> : vector<16x256xf32>
    %141 = tpu.matmul %138, %140, %cst_58 {dimension_numbers = #tpu.dot_dimension_numbers<[1], [0], [0], [1], [0, 0, 1, 1], [], []>} : vector<16x64xf32>, vector<64x256xf32>, vector<16x256xf32> -> vector<16x256xf32>
    %c0_59 = arith.constant 0 : index
    %c0_60 = arith.constant 0 : index
    %c0_61 = arith.constant 0 : index
    %142 = vector.load %arg14[%c0_59, %c0_60, %c0_61] : memref<2x1x256xf32, #tpu.memory_space<vmem>>, vector<1x1x256xf32>
    %143 = vector.shape_cast %142 : vector<1x1x256xf32> to vector<1x256xf32>
    %144 = vector.broadcast %143 : vector<1x256xf32> to vector<16x256xf32>
    %145 = arith.addf %141, %144 : vector<16x256xf32>
    %cst_62 = arith.constant 5.000000e-01 : f32
    %146 = vector.broadcast %cst_62 : f32 to vector<16x256xf32>
    %147 = arith.mulf %146, %145 : vector<16x256xf32>
    %cst_63 = arith.constant 0.707106769 : f32
    %148 = vector.broadcast %cst_63 : f32 to vector<16x256xf32>
    %149 = arith.mulf %145, %148 : vector<16x256xf32>
    %150 = math.erf %149 : vector<16x256xf32>
    %cst_64 = arith.constant 1.000000e+00 : f32
    %151 = vector.broadcast %cst_64 : f32 to vector<16x256xf32>
    %152 = arith.addf %151, %150 : vector<16x256xf32>
    %153 = arith.mulf %147, %152 : vector<16x256xf32>
    %c0_65 = arith.constant 0 : index
    %c0_66 = arith.constant 0 : index
    %c0_67 = arith.constant 0 : index
    %154 = vector.load %arg15[%c0_65, %c0_66, %c0_67] : memref<2x256x64xf32, #tpu.memory_space<vmem>>, vector<1x256x64xf32>
    %155 = vector.shape_cast %154 : vector<1x256x64xf32> to vector<256x64xf32>
    %cst_68 = arith.constant dense<0.000000e+00> : vector<16x64xf32>
    %156 = tpu.matmul %153, %155, %cst_68 {dimension_numbers = #tpu.dot_dimension_numbers<[1], [0], [0], [1], [0, 0, 1, 1], [], []>} : vector<16x256xf32>, vector<256x64xf32>, vector<16x64xf32> -> vector<16x64xf32>
    %c0_69 = arith.constant 0 : index
    %c0_70 = arith.constant 0 : index
    %c0_71 = arith.constant 0 : index
    %157 = vector.load %arg16[%c0_69, %c0_70, %c0_71] : memref<2x1x64xf32, #tpu.memory_space<vmem>>, vector<1x1x64xf32>
    %158 = vector.shape_cast %157 : vector<1x1x64xf32> to vector<1x64xf32>
    %159 = vector.broadcast %158 : vector<1x64xf32> to vector<16x64xf32>
    %160 = arith.addf %156, %159 : vector<16x64xf32>
    %161 = arith.addf %160, %138 : vector<16x64xf32>
    %c0_72 = arith.constant 0 : index
    %c0_73 = arith.constant 0 : index
    %c0_74 = arith.constant 0 : index
    %162 = vector.load %arg17[%c0_72, %c0_73, %c0_74] : memref<2x1x64xf32, #tpu.memory_space<vmem>>, vector<1x1x64xf32>
    %163 = vector.shape_cast %162 : vector<1x1x64xf32> to vector<1x64xf32>
    %c0_75 = arith.constant 0 : index
    %c0_76 = arith.constant 0 : index
    %c0_77 = arith.constant 0 : index
    %164 = vector.load %arg18[%c0_75, %c0_76, %c0_77] : memref<2x1x64xf32, #tpu.memory_space<vmem>>, vector<1x1x64xf32>
    %165 = vector.shape_cast %164 : vector<1x1x64xf32> to vector<1x64xf32>
    %cst_78 = arith.constant dense<0.000000e+00> : vector<16xf32>
    %166 = vector.multi_reduction <add>, %161, %cst_78 [1] : vector<16x64xf32> to vector<16xf32>
    %167 = vector.shape_cast %166 : vector<16xf32> to vector<16x1xf32>
    %cst_79 = arith.constant 6.400000e+01 : f32
    %168 = vector.broadcast %cst_79 : f32 to vector<16x1xf32>
    %169 = arith.divf %167, %168 : vector<16x1xf32>
    %170 = vector.broadcast %169 : vector<16x1xf32> to vector<16x64xf32>
    %171 = arith.subf %161, %170 : vector<16x64xf32>
    %172 = arith.mulf %171, %171 : vector<16x64xf32>
    %cst_80 = arith.constant dense<0.000000e+00> : vector<16xf32>
    %173 = vector.multi_reduction <add>, %172, %cst_80 [1] : vector<16x64xf32> to vector<16xf32>
    %174 = vector.shape_cast %173 : vector<16xf32> to vector<16x1xf32>
    %cst_81 = arith.constant 6.400000e+01 : f32
    %175 = vector.broadcast %cst_81 : f32 to vector<16x1xf32>
    %176 = arith.divf %174, %175 : vector<16x1xf32>
    %177 = vector.broadcast %169 : vector<16x1xf32> to vector<16x64xf32>
    %178 = arith.subf %161, %177 : vector<16x64xf32>
    %cst_82 = arith.constant 9.99999996E-13 : f32
    %179 = vector.broadcast %cst_82 : f32 to vector<16x1xf32>
    %180 = arith.addf %176, %179 : vector<16x1xf32>
    %181 = math.rsqrt %180 : vector<16x1xf32>
    %182 = vector.broadcast %181 : vector<16x1xf32> to vector<16x64xf32>
    %183 = arith.mulf %178, %182 : vector<16x64xf32>
    %184 = vector.broadcast %163 : vector<1x64xf32> to vector<16x64xf32>
    %185 = arith.mulf %183, %184 : vector<16x64xf32>
    %186 = vector.broadcast %165 : vector<1x64xf32> to vector<16x64xf32>
    %187 = arith.addf %185, %186 : vector<16x64xf32>
    %c1 = arith.constant 1 : index
    %c0_83 = arith.constant 0 : index
    %c0_84 = arith.constant 0 : index
    %188 = vector.load %arg7[%c1, %c0_83, %c0_84] : memref<2x64x384xf32, #tpu.memory_space<vmem>>, vector<1x64x384xf32>
    %189 = vector.shape_cast %188 : vector<1x64x384xf32> to vector<64x384xf32>
    %cst_85 = arith.constant dense<0.000000e+00> : vector<16x384xf32>
    %190 = tpu.matmul %187, %189, %cst_85 {dimension_numbers = #tpu.dot_dimension_numbers<[1], [0], [0], [1], [0, 0, 1, 1], [], []>} : vector<16x64xf32>, vector<64x384xf32>, vector<16x384xf32> -> vector<16x384xf32>
    %c1_86 = arith.constant 1 : index
    %c0_87 = arith.constant 0 : index
    %c0_88 = arith.constant 0 : index
    %191 = vector.load %arg8[%c1_86, %c0_87, %c0_88] : memref<2x1x384xf32, #tpu.memory_space<vmem>>, vector<1x1x384xf32>
    %192 = vector.shape_cast %191 : vector<1x1x384xf32> to vector<1x384xf32>
    %193 = vector.broadcast %192 : vector<1x384xf32> to vector<16x384xf32>
    %194 = arith.addf %190, %193 : vector<16x384xf32>
    %195 = vector.extract_strided_slice %194 {offsets = [0, 0], sizes = [16, 128], strides = [1, 1]} : vector<16x384xf32> to vector<16x128xf32>
    %196 = vector.extract_strided_slice %194 {offsets = [0, 128], sizes = [16, 128], strides = [1, 1]} : vector<16x384xf32> to vector<16x128xf32>
    %197 = vector.extract_strided_slice %194 {offsets = [0, 256], sizes = [16, 128], strides = [1, 1]} : vector<16x384xf32> to vector<16x128xf32>
    %cst_89 = arith.constant 0.000000e+00 : f32
    %198 = vector.broadcast %cst_89 : f32 to vector<16x128xf32>
    %199 = vector.broadcast %50 : vector<1x128xf32> to vector<16x128xf32>
    %200 = arith.mulf %195, %199 : vector<16x128xf32>
    %cst_90 = arith.constant dense<0.000000e+00> : vector<16x16xf32>
    %201 = tpu.matmul %200, %196, %cst_90 {dimension_numbers = #tpu.dot_dimension_numbers<[1], [1], [0], [0], [0, 0, 1, 0], [], []>} : vector<16x128xf32>, vector<16x128xf32>, vector<16x16xf32> -> vector<16x16xf32>
    %202 = arith.addf %201, %42 : vector<16x16xf32>
    %cst_91 = arith.constant dense<0xFF800000> : vector<16xf32>
    %203 = vector.multi_reduction <maximumf>, %202, %cst_91 [1] : vector<16x16xf32> to vector<16xf32>
    %204 = vector.shape_cast %203 : vector<16xf32> to vector<16x1xf32>
    %205 = vector.broadcast %204 : vector<16x1xf32> to vector<16x16xf32>
    %206 = arith.subf %202, %205 : vector<16x16xf32>
    %207 = math.exp %206 : vector<16x16xf32>
    %cst_92 = arith.constant dense<0.000000e+00> : vector<16xf32>
    %208 = vector.multi_reduction <add>, %207, %cst_92 [1] : vector<16x16xf32> to vector<16xf32>
    %209 = vector.shape_cast %208 : vector<16xf32> to vector<16x1xf32>
    %210 = tpu.reciprocal %209 {approx = true} : vector<16x1xf32> -> vector<16x1xf32>
    %211 = vector.broadcast %210 : vector<16x1xf32> to vector<16x16xf32>
    %212 = arith.mulf %207, %211 : vector<16x16xf32>
    %213 = vector.broadcast %50 : vector<1x128xf32> to vector<16x128xf32>
    %214 = arith.mulf %197, %213 : vector<16x128xf32>
    %cst_93 = arith.constant dense<0.000000e+00> : vector<16x128xf32>
    %215 = tpu.matmul %212, %214, %cst_93 {dimension_numbers = #tpu.dot_dimension_numbers<[1], [0], [0], [1], [0, 0, 1, 1], [], []>} : vector<16x16xf32>, vector<16x128xf32>, vector<16x128xf32> -> vector<16x128xf32>
    %216 = arith.addf %198, %215 : vector<16x128xf32>
    %217 = vector.broadcast %57 : vector<1x128xf32> to vector<16x128xf32>
    %218 = arith.mulf %195, %217 : vector<16x128xf32>
    %cst_94 = arith.constant dense<0.000000e+00> : vector<16x16xf32>
    %219 = tpu.matmul %218, %196, %cst_94 {dimension_numbers = #tpu.dot_dimension_numbers<[1], [1], [0], [0], [0, 0, 1, 0], [], []>} : vector<16x128xf32>, vector<16x128xf32>, vector<16x16xf32> -> vector<16x16xf32>
    %220 = arith.addf %219, %42 : vector<16x16xf32>
    %cst_95 = arith.constant dense<0xFF800000> : vector<16xf32>
    %221 = vector.multi_reduction <maximumf>, %220, %cst_95 [1] : vector<16x16xf32> to vector<16xf32>
    %222 = vector.shape_cast %221 : vector<16xf32> to vector<16x1xf32>
    %223 = vector.broadcast %222 : vector<16x1xf32> to vector<16x16xf32>
    %224 = arith.subf %220, %223 : vector<16x16xf32>
    %225 = math.exp %224 : vector<16x16xf32>
    %cst_96 = arith.constant dense<0.000000e+00> : vector<16xf32>
    %226 = vector.multi_reduction <add>, %225, %cst_96 [1] : vector<16x16xf32> to vector<16xf32>
    %227 = vector.shape_cast %226 : vector<16xf32> to vector<16x1xf32>
    %228 = tpu.reciprocal %227 {approx = true} : vector<16x1xf32> -> vector<16x1xf32>
    %229 = vector.broadcast %228 : vector<16x1xf32> to vector<16x16xf32>
    %230 = arith.mulf %225, %229 : vector<16x16xf32>
    %231 = vector.broadcast %57 : vector<1x128xf32> to vector<16x128xf32>
    %232 = arith.mulf %197, %231 : vector<16x128xf32>
    %cst_97 = arith.constant dense<0.000000e+00> : vector<16x128xf32>
    %233 = tpu.matmul %230, %232, %cst_97 {dimension_numbers = #tpu.dot_dimension_numbers<[1], [0], [0], [1], [0, 0, 1, 1], [], []>} : vector<16x16xf32>, vector<16x128xf32>, vector<16x128xf32> -> vector<16x128xf32>
    %234 = arith.addf %216, %233 : vector<16x128xf32>
    %c1_98 = arith.constant 1 : index
    %c0_99 = arith.constant 0 : index
    %c0_100 = arith.constant 0 : index
    %235 = vector.load %arg9[%c1_98, %c0_99, %c0_100] : memref<2x128x64xf32, #tpu.memory_space<vmem>>, vector<1x128x64xf32>
    %236 = vector.shape_cast %235 : vector<1x128x64xf32> to vector<128x64xf32>
    %cst_101 = arith.constant dense<0.000000e+00> : vector<16x64xf32>
    %237 = tpu.matmul %234, %236, %cst_101 {dimension_numbers = #tpu.dot_dimension_numbers<[1], [0], [0], [1], [0, 0, 1, 1], [], []>} : vector<16x128xf32>, vector<128x64xf32>, vector<16x64xf32> -> vector<16x64xf32>
    %c1_102 = arith.constant 1 : index
    %c0_103 = arith.constant 0 : index
    %c0_104 = arith.constant 0 : index
    %238 = vector.load %arg10[%c1_102, %c0_103, %c0_104] : memref<2x1x64xf32, #tpu.memory_space<vmem>>, vector<1x1x64xf32>
    %239 = vector.shape_cast %238 : vector<1x1x64xf32> to vector<1x64xf32>
    %240 = vector.broadcast %239 : vector<1x64xf32> to vector<16x64xf32>
    %241 = arith.addf %237, %240 : vector<16x64xf32>
    %242 = arith.addf %241, %187 : vector<16x64xf32>
    %c1_105 = arith.constant 1 : index
    %c0_106 = arith.constant 0 : index
    %c0_107 = arith.constant 0 : index
    %243 = vector.load %arg11[%c1_105, %c0_106, %c0_107] : memref<2x1x64xf32, #tpu.memory_space<vmem>>, vector<1x1x64xf32>
    %244 = vector.shape_cast %243 : vector<1x1x64xf32> to vector<1x64xf32>
    %c1_108 = arith.constant 1 : index
    %c0_109 = arith.constant 0 : index
    %c0_110 = arith.constant 0 : index
    %245 = vector.load %arg12[%c1_108, %c0_109, %c0_110] : memref<2x1x64xf32, #tpu.memory_space<vmem>>, vector<1x1x64xf32>
    %246 = vector.shape_cast %245 : vector<1x1x64xf32> to vector<1x64xf32>
    %cst_111 = arith.constant dense<0.000000e+00> : vector<16xf32>
    %247 = vector.multi_reduction <add>, %242, %cst_111 [1] : vector<16x64xf32> to vector<16xf32>
    %248 = vector.shape_cast %247 : vector<16xf32> to vector<16x1xf32>
    %cst_112 = arith.constant 6.400000e+01 : f32
    %249 = vector.broadcast %cst_112 : f32 to vector<16x1xf32>
    %250 = arith.divf %248, %249 : vector<16x1xf32>
    %251 = vector.broadcast %250 : vector<16x1xf32> to vector<16x64xf32>
    %252 = arith.subf %242, %251 : vector<16x64xf32>
    %253 = arith.mulf %252, %252 : vector<16x64xf32>
    %cst_113 = arith.constant dense<0.000000e+00> : vector<16xf32>
    %254 = vector.multi_reduction <add>, %253, %cst_113 [1] : vector<16x64xf32> to vector<16xf32>
    %255 = vector.shape_cast %254 : vector<16xf32> to vector<16x1xf32>
    %cst_114 = arith.constant 6.400000e+01 : f32
    %256 = vector.broadcast %cst_114 : f32 to vector<16x1xf32>
    %257 = arith.divf %255, %256 : vector<16x1xf32>
    %258 = vector.broadcast %250 : vector<16x1xf32> to vector<16x64xf32>
    %259 = arith.subf %242, %258 : vector<16x64xf32>
    %cst_115 = arith.constant 9.99999996E-13 : f32
    %260 = vector.broadcast %cst_115 : f32 to vector<16x1xf32>
    %261 = arith.addf %257, %260 : vector<16x1xf32>
    %262 = math.rsqrt %261 : vector<16x1xf32>
    %263 = vector.broadcast %262 : vector<16x1xf32> to vector<16x64xf32>
    %264 = arith.mulf %259, %263 : vector<16x64xf32>
    %265 = vector.broadcast %244 : vector<1x64xf32> to vector<16x64xf32>
    %266 = arith.mulf %264, %265 : vector<16x64xf32>
    %267 = vector.broadcast %246 : vector<1x64xf32> to vector<16x64xf32>
    %268 = arith.addf %266, %267 : vector<16x64xf32>
    %c1_116 = arith.constant 1 : index
    %c0_117 = arith.constant 0 : index
    %c0_118 = arith.constant 0 : index
    %269 = vector.load %arg13[%c1_116, %c0_117, %c0_118] : memref<2x64x256xf32, #tpu.memory_space<vmem>>, vector<1x64x256xf32>
    %270 = vector.shape_cast %269 : vector<1x64x256xf32> to vector<64x256xf32>
    %cst_119 = arith.constant dense<0.000000e+00> : vector<16x256xf32>
    %271 = tpu.matmul %268, %270, %cst_119 {dimension_numbers = #tpu.dot_dimension_numbers<[1], [0], [0], [1], [0, 0, 1, 1], [], []>} : vector<16x64xf32>, vector<64x256xf32>, vector<16x256xf32> -> vector<16x256xf32>
    %c1_120 = arith.constant 1 : index
    %c0_121 = arith.constant 0 : index
    %c0_122 = arith.constant 0 : index
    %272 = vector.load %arg14[%c1_120, %c0_121, %c0_122] : memref<2x1x256xf32, #tpu.memory_space<vmem>>, vector<1x1x256xf32>
    %273 = vector.shape_cast %272 : vector<1x1x256xf32> to vector<1x256xf32>
    %274 = vector.broadcast %273 : vector<1x256xf32> to vector<16x256xf32>
    %275 = arith.addf %271, %274 : vector<16x256xf32>
    %cst_123 = arith.constant 5.000000e-01 : f32
    %276 = vector.broadcast %cst_123 : f32 to vector<16x256xf32>
    %277 = arith.mulf %276, %275 : vector<16x256xf32>
    %cst_124 = arith.constant 0.707106769 : f32
    %278 = vector.broadcast %cst_124 : f32 to vector<16x256xf32>
    %279 = arith.mulf %275, %278 : vector<16x256xf32>
    %280 = math.erf %279 : vector<16x256xf32>
    %cst_125 = arith.constant 1.000000e+00 : f32
    %281 = vector.broadcast %cst_125 : f32 to vector<16x256xf32>
    %282 = arith.addf %281, %280 : vector<16x256xf32>
    %283 = arith.mulf %277, %282 : vector<16x256xf32>
    %c1_126 = arith.constant 1 : index
    %c0_127 = arith.constant 0 : index
    %c0_128 = arith.constant 0 : index
    %284 = vector.load %arg15[%c1_126, %c0_127, %c0_128] : memref<2x256x64xf32, #tpu.memory_space<vmem>>, vector<1x256x64xf32>
    %285 = vector.shape_cast %284 : vector<1x256x64xf32> to vector<256x64xf32>
    %cst_129 = arith.constant dense<0.000000e+00> : vector<16x64xf32>
    %286 = tpu.matmul %283, %285, %cst_129 {dimension_numbers = #tpu.dot_dimension_numbers<[1], [0], [0], [1], [0, 0, 1, 1], [], []>} : vector<16x256xf32>, vector<256x64xf32>, vector<16x64xf32> -> vector<16x64xf32>
    %c1_130 = arith.constant 1 : index
    %c0_131 = arith.constant 0 : index
    %c0_132 = arith.constant 0 : index
    %287 = vector.load %arg16[%c1_130, %c0_131, %c0_132] : memref<2x1x64xf32, #tpu.memory_space<vmem>>, vector<1x1x64xf32>
    %288 = vector.shape_cast %287 : vector<1x1x64xf32> to vector<1x64xf32>
    %289 = vector.broadcast %288 : vector<1x64xf32> to vector<16x64xf32>
    %290 = arith.addf %286, %289 : vector<16x64xf32>
    %291 = arith.addf %290, %268 : vector<16x64xf32>
    %c1_133 = arith.constant 1 : index
    %c0_134 = arith.constant 0 : index
    %c0_135 = arith.constant 0 : index
    %292 = vector.load %arg17[%c1_133, %c0_134, %c0_135] : memref<2x1x64xf32, #tpu.memory_space<vmem>>, vector<1x1x64xf32>
    %293 = vector.shape_cast %292 : vector<1x1x64xf32> to vector<1x64xf32>
    %c1_136 = arith.constant 1 : index
    %c0_137 = arith.constant 0 : index
    %c0_138 = arith.constant 0 : index
    %294 = vector.load %arg18[%c1_136, %c0_137, %c0_138] : memref<2x1x64xf32, #tpu.memory_space<vmem>>, vector<1x1x64xf32>
    %295 = vector.shape_cast %294 : vector<1x1x64xf32> to vector<1x64xf32>
    %cst_139 = arith.constant dense<0.000000e+00> : vector<16xf32>
    %296 = vector.multi_reduction <add>, %291, %cst_139 [1] : vector<16x64xf32> to vector<16xf32>
    %297 = vector.shape_cast %296 : vector<16xf32> to vector<16x1xf32>
    %cst_140 = arith.constant 6.400000e+01 : f32
    %298 = vector.broadcast %cst_140 : f32 to vector<16x1xf32>
    %299 = arith.divf %297, %298 : vector<16x1xf32>
    %300 = vector.broadcast %299 : vector<16x1xf32> to vector<16x64xf32>
    %301 = arith.subf %291, %300 : vector<16x64xf32>
    %302 = arith.mulf %301, %301 : vector<16x64xf32>
    %cst_141 = arith.constant dense<0.000000e+00> : vector<16xf32>
    %303 = vector.multi_reduction <add>, %302, %cst_141 [1] : vector<16x64xf32> to vector<16xf32>
    %304 = vector.shape_cast %303 : vector<16xf32> to vector<16x1xf32>
    %cst_142 = arith.constant 6.400000e+01 : f32
    %305 = vector.broadcast %cst_142 : f32 to vector<16x1xf32>
    %306 = arith.divf %304, %305 : vector<16x1xf32>
    %307 = vector.broadcast %299 : vector<16x1xf32> to vector<16x64xf32>
    %308 = arith.subf %291, %307 : vector<16x64xf32>
    %cst_143 = arith.constant 9.99999996E-13 : f32
    %309 = vector.broadcast %cst_143 : f32 to vector<16x1xf32>
    %310 = arith.addf %306, %309 : vector<16x1xf32>
    %311 = math.rsqrt %310 : vector<16x1xf32>
    %312 = vector.broadcast %311 : vector<16x1xf32> to vector<16x64xf32>
    %313 = arith.mulf %308, %312 : vector<16x64xf32>
    %314 = vector.broadcast %293 : vector<1x64xf32> to vector<16x64xf32>
    %315 = arith.mulf %313, %314 : vector<16x64xf32>
    %316 = vector.broadcast %295 : vector<1x64xf32> to vector<16x64xf32>
    %317 = arith.addf %315, %316 : vector<16x64xf32>
    %c0_144 = arith.constant 0 : index
    %c0_145 = arith.constant 0 : index
    %318 = vector.load %arg19[%c0_144, %c0_145] : memref<64x128xf32, #tpu.memory_space<vmem>>, vector<64x128xf32>
    %cst_146 = arith.constant dense<0.000000e+00> : vector<16x128xf32>
    %319 = tpu.matmul %317, %318, %cst_146 {dimension_numbers = #tpu.dot_dimension_numbers<[1], [0], [0], [1], [0, 0, 1, 1], [], []>} : vector<16x64xf32>, vector<64x128xf32>, vector<16x128xf32> -> vector<16x128xf32>
    %c0_147 = arith.constant 0 : index
    %c0_148 = arith.constant 0 : index
    %320 = vector.load %arg20[%c0_147, %c0_148] : memref<1x128xf32, #tpu.memory_space<vmem>>, vector<1x128xf32>
    %321 = vector.broadcast %320 : vector<1x128xf32> to vector<16x128xf32>
    %322 = arith.addf %319, %321 : vector<16x128xf32>
    %323 = tpu.iota {dimensions = array<i32: 0>} : vector<2x16xi32>
    %324 = tpu.iota {dimensions = array<i32: 1>} : vector<2x16xi32>
    %c8_i32 = arith.constant 8 : i32
    %325 = vector.broadcast %c8_i32 : i32 to vector<2x16xi32>
    %326 = arith.muli %323, %325 : vector<2x16xi32>
    %327 = arith.cmpi eq, %324, %326 : vector<2x16xi32>
    %328 = arith.extui %327 : vector<2x16xi1> to vector<2x16xi32>
    %329 = arith.sitofp %328 : vector<2x16xi32> to vector<2x16xf32>
    %cst_149 = arith.constant dense<0.000000e+00> : vector<2x128xf32>
    %330 = tpu.matmul %329, %322, %cst_149 {dimension_numbers = #tpu.dot_dimension_numbers<[1], [0], [0], [1], [0, 0, 1, 1], [], []>} : vector<2x16xf32>, vector<16x128xf32>, vector<2x128xf32> -> vector<2x128xf32>
    %c0_150 = arith.constant 0 : index
    %c0_151 = arith.constant 0 : index
    %331 = vector.load %arg21[%c0_150, %c0_151] : memref<2x128xf32, #tpu.memory_space<vmem>>, vector<2x128xf32>
    tpu.vector_store %arg21[%c0_150, %c0_151], %330 {strides = array<i32>} : memref<2x128xf32, #tpu.memory_space<vmem>>, vector<2x128xf32>,
    return
  }
}

</mosaic_0001>

<llo_original>
// kernel: multilabel_bert_forward.1
$region0: #{multilabel_bert_forward.1}
  #allocation0 [shape = 'u32[]', space=smem, size = 0x4, offset = 0x4, fixed_abs, tag = 'smem constant byte address 0x4 - core index']
  #allocation1 [shape = 'u32[72,128]{1,0:T(1,128)}', space=vmem, size = 0x9000, scoped, tag = 'internal scratch']
  %s0 = inlined_call_operand.vmem [shape: s32[16,1], index: 0, kind: input, shape index: {}]
  %s1 = inlined_call_operand.vmem [shape: s32[1,16], index: 1, kind: input, shape index: {}]
  %s2 = inlined_call_operand.vmem [shape: f32[64,64], index: 2, kind: input, shape index: {}]
  %s3 = inlined_call_operand.vmem [shape: f32[16,64], index: 3, kind: input, shape index: {}]
  %s4 = inlined_call_operand.vmem [shape: f32[16,16], index: 4, kind: input, shape index: {}]
  %s5 = inlined_call_operand.vmem [shape: f32[1,64], index: 5, kind: input, shape index: {}]
  %s6 = inlined_call_operand.vmem [shape: f32[1,64], index: 6, kind: input, shape index: {}]
  %s7 = inlined_call_operand.vmem [shape: f32[2,64,384], index: 7, kind: input, shape index: {}]
  %s8 = inlined_call_operand.vmem [shape: f32[2,1,384], index: 8, kind: input, shape index: {}]
  %s9 = inlined_call_operand.vmem [shape: f32[2,128,64], index: 9, kind: input, shape index: {}]
  %s10 = inlined_call_operand.vmem [shape: f32[2,1,64], index: 10, kind: input, shape index: {}]
  %s11 = inlined_call_operand.vmem [shape: f32[2,1,64], index: 11, kind: input, shape index: {}]
  %s12 = inlined_call_operand.vmem [shape: f32[2,1,64], index: 12, kind: input, shape index: {}]
  %s13 = inlined_call_operand.vmem [shape: f32[2,64,256], index: 13, kind: input, shape index: {}]
  %s14 = inlined_call_operand.vmem [shape: f32[2,1,256], index: 14, kind: input, shape index: {}]
  %s15 = inlined_call_operand.vmem [shape: f32[2,256,64], index: 15, kind: input, shape index: {}]
  %s16 = inlined_call_operand.vmem [shape: f32[2,1,64], index: 16, kind: input, shape index: {}]
  %s17 = inlined_call_operand.vmem [shape: f32[2,1,64], index: 17, kind: input, shape index: {}]
  %s18 = inlined_call_operand.vmem [shape: f32[2,1,64], index: 18, kind: input, shape index: {}]
  %s19 = inlined_call_operand.vmem [shape: f32[64,128], index: 19, kind: input, shape index: {}]
  %s20 = inlined_call_operand.vmem [shape: f32[1,128], index: 20, kind: input, shape index: {}]
  %s21 = inlined_call_operand.hbm [shape: f32[2,128], index: 21, kind: output, shape index: {}]
  %s22 = sld [smem:[#allocation0]]
  $region94: #{multilabel_bert_forward.1} parent=0
    _
  %s24 = ssub.s32 1, %s22
  %s25 = scalar_select 0, %s24, %s22
  $region1: #{multilabel_bert_forward.1} parent=0
    #allocation2 [shape = 'u8[1024]{0}', space=vmem, size = 0x400, scoped, tag = 'output window, operand 0, single buffered']
    #allocation3 [shape = 's32[1]{0}', space=sflag, size = 0x4, scoped, tag = 'scoped memory for multilabel_bert_forward.1']
    %26 = vsyncpa [#allocation3], 0
    // Predicated region
    $region2: #{multilabel_bert_forward.1} parent=1 // pred_check
      _
    $region3: #{multilabel_bert_forward.1} parent=1 // pred_check_branch
      %28 = sbr.rel (0) target = $region5
    $region4: #{multilabel_bert_forward.1} parent=1 // pred_region
      _
    $region5: #{multilabel_bert_forward.1} parent=1 // pred_fallthru
      _
    // Predicated region
    $region6: #{multilabel_bert_forward.1} parent=1 // pred_check
      _
    $region7: #{multilabel_bert_forward.1} parent=1 // pred_check_branch
      %30 = sbr.rel (0) target = $region9
    $region8: #{multilabel_bert_forward.1} parent=1 // pred_region
      _
    $region9: #{multilabel_bert_forward.1} parent=1 // pred_fallthru
      _
    // Predicated region
    $region10: #{multilabel_bert_forward.1} parent=1 // pred_check
      _
    $region11: #{multilabel_bert_forward.1} parent=1 // pred_check_branch
      %32 = sbr.rel (0) target = $region13
    $region12: #{multilabel_bert_forward.1} parent=1 // pred_region
      _
    $region13: #{multilabel_bert_forward.1} parent=1 // pred_fallthru
      _
    // Predicated region
    $region14: #{multilabel_bert_forward.1} parent=1 // pred_check
      _
    $region15: #{multilabel_bert_forward.1} parent=1 // pred_check_branch
      %34 = sbr.rel (0) target = $region17
    $region16: #{multilabel_bert_forward.1} parent=1 // pred_region
      _
    $region17: #{multilabel_bert_forward.1} parent=1 // pred_fallthru
      _
    // Predicated region
    $region18: #{multilabel_bert_forward.1} parent=1 // pred_check
      _
    $region19: #{multilabel_bert_forward.1} parent=1 // pred_check_branch
      %36 = sbr.rel (0) target = $region21
    $region20: #{multilabel_bert_forward.1} parent=1 // pred_region
      _
    $region21: #{multilabel_bert_forward.1} parent=1 // pred_fallthru
      _
    // Predicated region
    $region22: #{multilabel_bert_forward.1} parent=1 // pred_check
      _
    $region23: #{multilabel_bert_forward.1} parent=1 // pred_check_branch
      %38 = sbr.rel (0) target = $region25
    $region24: #{multilabel_bert_forward.1} parent=1 // pred_region
      _
    $region25: #{multilabel_bert_forward.1} parent=1 // pred_fallthru
      _
    // Predicated region
    $region26: #{multilabel_bert_forward.1} parent=1 // pred_check
      _
    $region27: #{multilabel_bert_forward.1} parent=1 // pred_check_branch
      %40 = sbr.rel (0) target = $region29
    $region28: #{multilabel_bert_forward.1} parent=1 // pred_region
      _
    $region29: #{multilabel_bert_forward.1} parent=1 // pred_fallthru
      _
    // Predicated region
    $region30: #{multilabel_bert_forward.1} parent=1 // pred_check
      _
    $region31: #{multilabel_bert_forward.1} parent=1 // pred_check_branch
      %42 = sbr.rel (0) target = $region33
    $region32: #{multilabel_bert_forward.1} parent=1 // pred_region
      _
    $region33: #{multilabel_bert_forward.1} parent=1 // pred_fallthru
      _
    // Predicated region
    $region34: #{multilabel_bert_forward.1} parent=1 // pred_check
      _
    $region35: #{multilabel_bert_forward.1} parent=1 // pred_check_branch
      %44 = sbr.rel (0) target = $region37
    $region36: #{multilabel_bert_forward.1} parent=1 // pred_region
      _
    $region37: #{multilabel_bert_forward.1} parent=1 // pred_fallthru
      _
    // Predicated region
    $region38: #{multilabel_bert_forward.1} parent=1 // pred_check
      _
    $region39: #{multilabel_bert_forward.1} parent=1 // pred_check_branch
      %46 = sbr.rel (0) target = $region41
    $region40: #{multilabel_bert_forward.1} parent=1 // pred_region
      _
    $region41: #{multilabel_bert_forward.1} parent=1 // pred_fallthru
      _
    // Predicated region
    $region42: #{multilabel_bert_forward.1} parent=1 // pred_check
      _
    $region43: #{multilabel_bert_forward.1} parent=1 // pred_check_branch
      %48 = sbr.rel (0) target = $region45
    $region44: #{multilabel_bert_forward.1} parent=1 // pred_region
      _
    $region45: #{multilabel_bert_forward.1} parent=1 // pred_fallthru
      _
    // Predicated region
    $region46: #{multilabel_bert_forward.1} parent=1 // pred_check
      _
    $region47: #{multilabel_bert_forward.1} parent=1 // pred_check_branch
      %50 = sbr.rel (0) target = $region49
    $region48: #{multilabel_bert_forward.1} parent=1 // pred_region
      _
    $region49: #{multilabel_bert_forward.1} parent=1 // pred_fallthru
      _
    // Predicated region
    $region50: #{multilabel_bert_forward.1} parent=1 // pred_check
      _
    $region51: #{multilabel_bert_forward.1} parent=1 // pred_check_branch
      %52 = sbr.rel (0) target = $region53
    $region52: #{multilabel_bert_forward.1} parent=1 // pred_region
      _
    $region53: #{multilabel_bert_forward.1} parent=1 // pred_fallthru
      _
    // Predicated region
    $region54: #{multilabel_bert_forward.1} parent=1 // pred_check
      _
    $region55: #{multilabel_bert_forward.1} parent=1 // pred_check_branch
      %54 = sbr.rel (0) target = $region57
    $region56: #{multilabel_bert_forward.1} parent=1 // pred_region
      _
    $region57: #{multilabel_bert_forward.1} parent=1 // pred_fallthru
      _
    // Predicated region
    $region58: #{multilabel_bert_forward.1} parent=1 // pred_check
      _
    $region59: #{multilabel_bert_forward.1} parent=1 // pred_check_branch
      %56 = sbr.rel (0) target = $region61
    $region60: #{multilabel_bert_forward.1} parent=1 // pred_region
      _
    $region61: #{multilabel_bert_forward.1} parent=1 // pred_fallthru
      _
    // Predicated region
    $region62: #{multilabel_bert_forward.1} parent=1 // pred_check
      _
    $region63: #{multilabel_bert_forward.1} parent=1 // pred_check_branch
      %58 = sbr.rel (0) target = $region65
    $region64: #{multilabel_bert_forward.1} parent=1 // pred_region
      _
    $region65: #{multilabel_bert_forward.1} parent=1 // pred_fallthru
      _
    // Predicated region
    $region66: #{multilabel_bert_forward.1} parent=1 // pred_check
      _
    $region67: #{multilabel_bert_forward.1} parent=1 // pred_check_branch
      %60 = sbr.rel (0) target = $region69
    $region68: #{multilabel_bert_forward.1} parent=1 // pred_region
      _
    $region69: #{multilabel_bert_forward.1} parent=1 // pred_fallthru
      _
    // Predicated region
    $region70: #{multilabel_bert_forward.1} parent=1 // pred_check
      _
    $region71: #{multilabel_bert_forward.1} parent=1 // pred_check_branch
      %62 = sbr.rel (0) target = $region73
    $region72: #{multilabel_bert_forward.1} parent=1 // pred_region
      _
    $region73: #{multilabel_bert_forward.1} parent=1 // pred_fallthru
      _
    // Predicated region
    $region74: #{multilabel_bert_forward.1} parent=1 // pred_check
      _
    $region75: #{multilabel_bert_forward.1} parent=1 // pred_check_branch
      %64 = sbr.rel (0) target = $region77
    $region76: #{multilabel_bert_forward.1} parent=1 // pred_region
      _
    $region77: #{multilabel_bert_forward.1} parent=1 // pred_fallthru
      _
    // Predicated region
    $region78: #{multilabel_bert_forward.1} parent=1 // pred_check
      _
    $region79: #{multilabel_bert_forward.1} parent=1 // pred_check_branch
      %66 = sbr.rel (0) target = $region81
    $region80: #{multilabel_bert_forward.1} parent=1 // pred_region
      _
    $region81: #{multilabel_bert_forward.1} parent=1 // pred_fallthru
      _
    // Predicated region
    $region82: #{multilabel_bert_forward.1} parent=1 // pred_check
      _
    $region83: #{multilabel_bert_forward.1} parent=1 // pred_check_branch
      %68 = sbr.rel (0) target = $region85
    $region84: #{multilabel_bert_forward.1} parent=1 // pred_region
      _
    $region85: #{multilabel_bert_forward.1} parent=1 // pred_fallthru
      _
    %v69 = vld [vmem:[%s0] sm:$0xff]
    %v70 = vld [vmem:[%s0 + $0x8] sm:$0xff]
    %v71 = vlaneseq
    %v72 = vand.u32 %v71, 127
    %73 = vset.pattern.permute.xlu0 0
    %74 = vperm.xlu0 %73, %v69
    %v75 = vpop.permute.xlu0 %74
    %76 = vset.pattern.permute.xlu0 0
    %77 = vperm.xlu0 %76, %v70
    %v78 = vpop.permute.xlu0 %77
    %vm79 = vcmp.eq.s32.totalorder %v75, %v72
    %vm80 = vcmp.eq.s32.totalorder %v78, %v72
    %v81 = vsel %vm79, 1, 0
    %v82 = vsel %vm80, 1, 0
    %v83 = vcvt.s32.f32 %v81
    %v84 = vcvt.s32.f32 %v82
    %v85 = vld [vmem:[%s2] sm:$0xff]
    %v86 = vld [vmem:[%s2 + $0x8] sm:$0xff]
    %v87 = vld [vmem:[%s2 + $0x10] sm:$0xff]
    %v88 = vld [vmem:[%s2 + $0x18] sm:$0xff]
    %v89 = vld [vmem:[%s2 + $0x20] sm:$0xff]
    %v90 = vld [vmem:[%s2 + $0x28] sm:$0xff]
    %v91 = vld [vmem:[%s2 + $0x30] sm:$0xff]
    %v92 = vld [vmem:[%s2 + $0x38] sm:$0xff]
    %v93 = vld [vmem:[%s3] sm:$0xff]
    %v94 = vld [vmem:[%s3 + $0x8] sm:$0xff]
    %vm95 = vcmask 523264
    %v97 = vsel %vm95, %v83, 0
    %v100 = vsel %vm95, %v84, 0
    %102 = vmatpush.msra.mxu0 0.0
    %103 = vmatpush.msra.mxu0 0.0
    %104 = vmatpush.msra.mxu0 0.0
    %105 = vmatpush.msra.mxu0 0.0
    %106 = vmatpush.msra.mxu0 0.0
    %107 = vmatpush.msra.mxu0 0.0
    %108 = vmatpush.msra.mxu0 0.0
    %109 = vmatpush.msra.mxu0 0.0
    %110 = vmatpush.msra.mxu0 %v92
    %111 = vmatpush.msra.mxu0 %v91
    %112 = vmatpush.msra.mxu0 %v90
    %113 = vmatpush.msra.mxu0 %v89
    %114 = vmatpush.msra.mxu0 %v88
    %115 = vmatpush.msra.mxu0 %v87
    %116 = vmatpush.msra.mxu0 %v86
    %117 = vmatpush.msra.mxu0 %v85
    %118 = vmatmul.f32.gmra.mxu0 %v97
    %v119 = vpop.f32.mrf.mxu0
    %v120 = vadd.f32 %v93, %v119
    %121 = vmatmul.f32.gmra.mxu0 %v100
    %v122 = vpop.f32.mrf.mxu0
    %v123 = vadd.f32 %v94, %v122
    %124 = vdwg.mxu0
    %v125 = vld [vmem:[%s5] sm:$0x1]
    %v126 = vld [vmem:[%s6] sm:$0x1]
    %v127 = vsel %vm95, %v120, 0.0
    %128 = vadd.xlane.f32.xlu0 %v127
    %v129 = vpop.xlane.xlu0 %128
    %v130 = vsel %vm95, %v123, 0.0
    %131 = vadd.xlane.f32.xlu0 %v130
    %v132 = vpop.xlane.xlu0 %131
    %v133 = vrcp.pop 64.0
    %v134 = vmul.f32 64.0, %v133
    %v135 = vsub.f32 1.0, %v134
    %v136 = vmul.f32 %v133, %v135
    %v137 = vadd.f32 %v133, %v136
    %vm138 = vweird.f32 %v133
    %v139 = vsel %vm138, %v133, %v137
    %v140 = vmul.f32 %v129, %v139
    %v141 = vmul.f32 %v132, %v139
    %v142 = vsub.f32 %v120, %v140
    %v143 = vsub.f32 %v123, %v141
    %v144 = vmul.f32 %v142, %v142
    %v145 = vmul.f32 %v143, %v143
    %v146 = vsel %vm95, %v144, 0.0
    %147 = vadd.xlane.f32.xlu0 %v146
    %v148 = vpop.xlane.xlu0 %147
    %v149 = vsel %vm95, %v145, 0.0
    %150 = vadd.xlane.f32.xlu0 %v149
    %v151 = vpop.xlane.xlu0 %150
    %v152 = vmul.f32 %v148, %v139
    %v153 = vmul.f32 %v151, %v139
    %v154 = vadd.f32 %v152, 1e-12
    %v155 = vadd.f32 %v153, 1e-12
    %v156 = vrsqrt.pop %v154
    %v157 = vmul.f32 %v156, %v154
    %v158 = vmul.f32 %v157, %v156
    %v159 = vmul.f32 0.5, %v158
    %v160 = vsub.f32 1.5, %v159
    %v161 = vmul.f32 %v156, %v160
    %vm162 = vweird.f32 %v154
    %vm163 = vweird.f32 %v156
    %vm164 = vmor %vm162, %vm163
    %v165 = vsel %vm164, %v156, %v161
    %v166 = vrsqrt.pop %v155
    %v167 = vmul.f32 %v166, %v155
    %v168 = vmul.f32 %v167, %v166
    %v169 = vmul.f32 0.5, %v168
    %v170 = vsub.f32 1.5, %v169
    %v171 = vmul.f32 %v166, %v170
    %vm172 = vweird.f32 %v155
    %vm173 = vweird.f32 %v166
    %vm174 = vmor %vm172, %vm173
    %v175 = vsel %vm174, %v166, %v171
    %v176 = vmul.f32 %v142, %v165
    %v177 = vmul.f32 %v143, %v175
    %v179 = vperm.slane %v125, 0
    %v181 = vmul.f32 %v176, %v179
    %v182 = vmul.f32 %v177, %v179
    %v184 = vperm.slane %v126, 0
    %v186 = vadd.f32 %v181, %v184
    %v187 = vadd.f32 %v182, %v184
    %v188 = vld [vmem:[%s1] sm:$0x1]
    %v189 = vcvt.s32.f32 %v188
    %v190 = vsub.f32 1.0, %v189
    %v191 = vmul.f32 %v190, -1e+09
    %v192 = vld [vmem:[%s4] sm:$0xff]
    %v193 = vld [vmem:[%s4 + $0x8] sm:$0xff]
    %v195 = vperm.slane %v191, 0
    %v197 = vadd.f32 %v192, %v195
    %v198 = vadd.f32 %v193, %v195
    %vm199 = vcmp.ge.s32.totalorder %v72, 0
    %vm200 = vcmp.lt.s32.totalorder %v72, 32
    %vm201 = vmand %vm199, %vm200
    %v202 = vsel %vm201, 1, 0
    %v203 = vcvt.s32.f32 %v202
    %vm204 = vcmp.ge.s32.totalorder %v72, 32
    %vm205 = vcmp.lt.s32.totalorder %v72, 64
    %vm206 = vmand %vm204, %vm205
    %v207 = vsel %vm206, 1, 0
    %v208 = vcvt.s32.f32 %v207
    %v209 = vld [vmem:[%s7] sm:$0xff]
    %v210 = vld [vmem:[%s7 + $0x8] sm:$0xff]
    %v211 = vld [vmem:[%s7 + $0x10] sm:$0xff]
    %v212 = vld [vmem:[%s7 + $0x18] sm:$0xff]
    %v213 = vld [vmem:[%s7 + $0x20] sm:$0xff]
    %v214 = vld [vmem:[%s7 + $0x28] sm:$0xff]
    %v215 = vld [vmem:[%s7 + $0x30] sm:$0xff]
    %v216 = vld [vmem:[%s7 + $0x38] sm:$0xff]
    %v217 = vld [vmem:[%s7 + $0x40] sm:$0xff]
    %v218 = vld [vmem:[%s7 + $0x48] sm:$0xff]
    %v219 = vld [vmem:[%s7 + $0x50] sm:$0xff]
    %v220 = vld [vmem:[%s7 + $0x58] sm:$0xff]
    %v221 = vld [vmem:[%s7 + $0x60] sm:$0xff]
    %v222 = vld [vmem:[%s7 + $0x68] sm:$0xff]
    %v223 = vld [vmem:[%s7 + $0x70] sm:$0xff]
    %v224 = vld [vmem:[%s7 + $0x78] sm:$0xff]
    %v225 = vld [vmem:[%s7 + $0x80] sm:$0xff]
    %v226 = vld [vmem:[%s7 + $0x88] sm:$0xff]
    %v227 = vld [vmem:[%s7 + $0x90] sm:$0xff]
    %v228 = vld [vmem:[%s7 + $0x98] sm:$0xff]
    %v229 = vld [vmem:[%s7 + $0xa0] sm:$0xff]
    %v230 = vld [vmem:[%s7 + $0xa8] sm:$0xff]
    %v231 = vld [vmem:[%s7 + $0xb0] sm:$0xff]
    %v232 = vld [vmem:[%s7 + $0xb8] sm:$0xff]
    %v233 = vld [vmem:[%s8] sm:$0x7]
    %v235 = vperm.slane %v233, 0
    %v236 = vperm.slane %v233, 1
    %v237 = vperm.slane %v233, 2
    %v242 = vsel %vm95, %v186, 0
    %v245 = vsel %vm95, %v187, 0
    %247 = vmatpush.msra.mxu0 0.0
    %248 = vmatpush.msra.mxu0 0.0
    %249 = vmatpush.msra.mxu0 0.0
    %250 = vmatpush.msra.mxu0 0.0
    %251 = vmatpush.msra.mxu0 0.0
    %252 = vmatpush.msra.mxu0 0.0
    %253 = vmatpush.msra.mxu0 0.0
    %254 = vmatpush.msra.mxu0 0.0
    %255 = vmatpush.msra.mxu0 %v230
    %256 = vmatpush.msra.mxu0 %v227
    %257 = vmatpush.msra.mxu0 %v224
    %258 = vmatpush.msra.mxu0 %v221
    %259 = vmatpush.msra.mxu0 %v218
    %260 = vmatpush.msra.mxu0 %v215
    %261 = vmatpush.msra.mxu0 %v212
    %262 = vmatpush.msra.mxu0 %v209
    %263 = vmatmul.f32.gmra.mxu0 %v242
    %v264 = vpop.f32.mrf.mxu0
    %v265 = vadd.f32 %v235, %v264
    %266 = vmatmul.f32.gmra.mxu0 %v245
    %v267 = vpop.f32.mrf.mxu0
    %v268 = vadd.f32 %v235, %v267
    %269 = vdwg.mxu0
    %270 = vmatpush.msra.mxu0 0.0
    %271 = vmatpush.msra.mxu0 0.0
    %272 = vmatpush.msra.mxu0 0.0
    %273 = vmatpush.msra.mxu0 0.0
    %274 = vmatpush.msra.mxu0 0.0
    %275 = vmatpush.msra.mxu0 0.0
    %276 = vmatpush.msra.mxu0 0.0
    %277 = vmatpush.msra.mxu0 0.0
    %278 = vmatpush.msra.mxu0 %v231
    %279 = vmatpush.msra.mxu0 %v228
    %280 = vmatpush.msra.mxu0 %v225
    %281 = vmatpush.msra.mxu0 %v222
    %282 = vmatpush.msra.mxu0 %v219
    %283 = vmatpush.msra.mxu0 %v216
    %284 = vmatpush.msra.mxu0 %v213
    %285 = vmatpush.msra.mxu0 %v210
    %286 = vmatmul.f32.gmra.mxu0 %v242
    %v287 = vpop.f32.mrf.mxu0
    %v288 = vadd.f32 %v236, %v287
    %289 = vmatmul.f32.gmra.mxu0 %v245
    %v290 = vpop.f32.mrf.mxu0
    %v291 = vadd.f32 %v236, %v290
    %292 = vdwg.mxu0
    %293 = vmatpush.msra.mxu0 0.0
    %294 = vmatpush.msra.mxu0 0.0
    %295 = vmatpush.msra.mxu0 0.0
    %296 = vmatpush.msra.mxu0 0.0
    %297 = vmatpush.msra.mxu0 0.0
    %298 = vmatpush.msra.mxu0 0.0
    %299 = vmatpush.msra.mxu0 0.0
    %300 = vmatpush.msra.mxu0 0.0
    %301 = vmatpush.msra.mxu0 %v232
    %302 = vmatpush.msra.mxu0 %v229
    %303 = vmatpush.msra.mxu0 %v226
    %304 = vmatpush.msra.mxu0 %v223
    %305 = vmatpush.msra.mxu0 %v220
    %306 = vmatpush.msra.mxu0 %v217
    %307 = vmatpush.msra.mxu0 %v214
    %308 = vmatpush.msra.mxu0 %v211
    %309 = vmatmul.f32.gmra.mxu0 %v242
    %v310 = vpop.f32.mrf.mxu0
    %v311 = vadd.f32 %v237, %v310
    %312 = vmatmul.f32.gmra.mxu0 %v245
    %v313 = vpop.f32.mrf.mxu0
    %v314 = vadd.f32 %v237, %v313
    %315 = vdwg.mxu0
    %v316 = vmul.f32 %v265, %v203
    %v317 = vmul.f32 %v268, %v203
    %318 = vmatpush.xpose.msra.mxu0 0.0
    %319 = vmatpush.xpose.msra.mxu0 0.0
    %320 = vmatpush.xpose.msra.mxu0 0.0
    %321 = vmatpush.xpose.msra.mxu0 0.0
    %322 = vmatpush.xpose.msra.mxu0 0.0
    %323 = vmatpush.xpose.msra.mxu0 0.0
    %324 = vmatpush.xpose.msra.mxu0 0.0
    %325 = vmatpush.xpose.msra.mxu0 0.0
    %326 = vmatpush.xpose.msra.mxu0 0.0
    %327 = vmatpush.xpose.msra.mxu0 0.0
    %328 = vmatpush.xpose.msra.mxu0 0.0
    %329 = vmatpush.xpose.msra.mxu0 0.0
    %330 = vmatpush.xpose.msra.mxu0 0.0
    %331 = vmatpush.xpose.msra.mxu0 0.0
    %332 = vmatpush.xpose.msra.mxu0 %v291
    %333 = vmatpush.xpose.msra.mxu0 %v288
    %334 = vmatmul.f32.gmra.mxu0 %v316
    %v335 = vpop.f32.mrf.mxu0
    %v336 = vadd.f32 %v197, %v335
    %337 = vmatmul.f32.gmra.mxu0 %v317
    %v338 = vpop.f32.mrf.mxu0
    %v339 = vadd.f32 %v198, %v338
    %340 = vdwg.mxu0
    %vm341 = vcmask 130048
    %v342 = vsel %vm341, %v336, -inf
    %343 = vmax.xlane.f32.xlu0 %v342
    %v344 = vpop.xlane.xlu0 %343
    %v345 = vsel %vm341, %v339, -inf
    %346 = vmax.xlane.f32.xlu0 %v345
    %v347 = vpop.xlane.xlu0 %346
    %v348 = vsub.f32 %v336, %v344
    %v349 = vsub.f32 %v339, %v347
    %v350 = vmul.f32 %v348, 1.442695
    %v351 = vpow.pop %v350
    %v352 = vmul.f32 %v349, 1.442695
    %v353 = vpow.pop %v352
    %v354 = vsel %vm341, %v351, 0.0
    %355 = vadd.xlane.f32.xlu0 %v354
    %v356 = vpop.xlane.xlu0 %355
    %v357 = vsel %vm341, %v353, 0.0
    %358 = vadd.xlane.f32.xlu0 %v357
    %v359 = vpop.xlane.xlu0 %358
    %v360 = vrcp.pop %v356
    %v361 = vrcp.pop %v359
    %v362 = vmul.f32 %v351, %v360
    %v363 = vmul.f32 %v353, %v361
    %v364 = vmul.f32 %v311, %v203
    %v365 = vmul.f32 %v314, %v203
    %v366 = vmul.f32 %v265, %v208
    %v367 = vmul.f32 %v268, %v208
    %368 = vmatpush.xpose.msra.mxu0 0.0
    %369 = vmatpush.xpose.msra.mxu0 0.0
    %370 = vmatpush.xpose.msra.mxu0 0.0
    %371 = vmatpush.xpose.msra.mxu0 0.0
    %372 = vmatpush.xpose.msra.mxu0 0.0
    %373 = vmatpush.xpose.msra.mxu0 0.0
    %374 = vmatpush.xpose.msra.mxu0 0.0
    %375 = vmatpush.xpose.msra.mxu0 0.0
    %376 = vmatpush.xpose.msra.mxu0 0.0
    %377 = vmatpush.xpose.msra.mxu0 0.0
    %378 = vmatpush.xpose.msra.mxu0 0.0
    %379 = vmatpush.xpose.msra.mxu0 0.0
    %380 = vmatpush.xpose.msra.mxu0 0.0
    %381 = vmatpush.xpose.msra.mxu0 0.0
    %382 = vmatpush.xpose.msra.mxu0 %v291
    %383 = vmatpush.xpose.msra.mxu0 %v288
    %384 = vmatmul.f32.gmra.mxu0 %v366
    %v385 = vpop.f32.mrf.mxu0
    %v386 = vadd.f32 %v197, %v385
    %387 = vmatmul.f32.gmra.mxu0 %v367
    %v388 = vpop.f32.mrf.mxu0
    %v389 = vadd.f32 %v198, %v388
    %390 = vdwg.mxu0
    %v391 = vsel %vm341, %v386, -inf
    %392 = vmax.xlane.f32.xlu0 %v391
    %v393 = vpop.xlane.xlu0 %392
    %v394 = vsel %vm341, %v389, -inf
    %395 = vmax.xlane.f32.xlu0 %v394
    %v396 = vpop.xlane.xlu0 %395
    %v397 = vsub.f32 %v386, %v393
    %v398 = vsub.f32 %v389, %v396
    %v399 = vmul.f32 %v397, 1.442695
    %v400 = vpow.pop %v399
    %v401 = vmul.f32 %v398, 1.442695
    %v402 = vpow.pop %v401
    %v403 = vsel %vm341, %v400, 0.0
    %404 = vadd.xlane.f32.xlu0 %v403
    %v405 = vpop.xlane.xlu0 %404
    %v406 = vsel %vm341, %v402, 0.0
    %407 = vadd.xlane.f32.xlu0 %v406
    %v408 = vpop.xlane.xlu0 %407
    %v409 = vrcp.pop %v405
    %v410 = vrcp.pop %v408
    %v411 = vmul.f32 %v400, %v409
    %v412 = vmul.f32 %v402, %v410
    %v413 = vmul.f32 %v311, %v208
    %v414 = vmul.f32 %v314, %v208
    %v416 = vsel %vm341, %v411, 0
    %v419 = vsel %vm341, %v412, 0
    %421 = vmatpush.msra.mxu0 0.0
    %422 = vmatpush.msra.mxu0 0.0
    %423 = vmatpush.msra.mxu0 0.0
    %424 = vmatpush.msra.mxu0 0.0
    %425 = vmatpush.msra.mxu0 0.0
    %426 = vmatpush.msra.mxu0 0.0
    %427 = vmatpush.msra.mxu0 0.0
    %428 = vmatpush.msra.mxu0 0.0
    %429 = vmatpush.msra.mxu0 0.0
    %430 = vmatpush.msra.mxu0 0.0
    %431 = vmatpush.msra.mxu0 0.0
    %432 = vmatpush.msra.mxu0 0.0
    %433 = vmatpush.msra.mxu0 0.0
    %434 = vmatpush.msra.mxu0 0.0
    %435 = vmatpush.msra.mxu0 %v414
    %436 = vmatpush.msra.mxu0 %v413
    %437 = vmatmul.f32.gmra.mxu0 %v416
    %v438 = vpop.f32.mrf.mxu0
    %v439 = vadd.f32 0.0, %v438
    %440 = vmatmul.f32.gmra.mxu0 %v419
    %v441 = vpop.f32.mrf.mxu0
    %v442 = vadd.f32 0.0, %v441
    %443 = vdwg.mxu0
    %v445 = vsel %vm341, %v362, 0
    %v448 = vsel %vm341, %v363, 0
    %450 = vmatpush.msra.mxu0 0.0
    %451 = vmatpush.msra.mxu0 0.0
    %452 = vmatpush.msra.mxu0 0.0
    %453 = vmatpush.msra.mxu0 0.0
    %454 = vmatpush.msra.mxu0 0.0
    %455 = vmatpush.msra.mxu0 0.0
    %456 = vmatpush.msra.mxu0 0.0
    %457 = vmatpush.msra.mxu0 0.0
    %458 = vmatpush.msra.mxu0 0.0
    %459 = vmatpush.msra.mxu0 0.0
    %460 = vmatpush.msra.mxu0 0.0
    %461 = vmatpush.msra.mxu0 0.0
    %462 = vmatpush.msra.mxu0 0.0
    %463 = vmatpush.msra.mxu0 0.0
    %464 = vmatpush.msra.mxu0 %v365
    %465 = vmatpush.msra.mxu0 %v364
    %466 = vmatmul.f32.gmra.mxu0 %v445
    %v467 = vpop.f32.mrf.mxu0
    %v468 = vadd.f32 %v439, %v467
    %469 = vmatmul.f32.gmra.mxu0 %v448
    %v470 = vpop.f32.mrf.mxu0
    %v471 = vadd.f32 %v442, %v470
    %472 = vdwg.mxu0
    %v473 = vld [vmem:[%s9] sm:$0xff]
    %v474 = vld [vmem:[%s9 + $0x8] sm:$0xff]
    %v475 = vld [vmem:[%s9 + $0x10] sm:$0xff]
    %v476 = vld [vmem:[%s9 + $0x18] sm:$0xff]
    %v477 = vld [vmem:[%s9 + $0x20] sm:$0xff]
    %v478 = vld [vmem:[%s9 + $0x28] sm:$0xff]
    %v479 = vld [vmem:[%s9 + $0x30] sm:$0xff]
    %v480 = vld [vmem:[%s9 + $0x38] sm:$0xff]
    %v481 = vld [vmem:[%s9 + $0x40] sm:$0xff]
    %v482 = vld [vmem:[%s9 + $0x48] sm:$0xff]
    %v483 = vld [vmem:[%s9 + $0x50] sm:$0xff]
    %v484 = vld [vmem:[%s9 + $0x58] sm:$0xff]
    %v485 = vld [vmem:[%s9 + $0x60] sm:$0xff]
    %v486 = vld [vmem:[%s9 + $0x68] sm:$0xff]
    %v487 = vld [vmem:[%s9 + $0x70] sm:$0xff]
    %v488 = vld [vmem:[%s9 + $0x78] sm:$0xff]
    %v489 = vld [vmem:[%s10] sm:$0x1]
    %v491 = vperm.slane %v489, 0
    %493 = vmatpush.msra.mxu0 %v488
    %494 = vmatpush.msra.mxu0 %v487
    %495 = vmatpush.msra.mxu0 %v486
    %496 = vmatpush.msra.mxu0 %v485
    %497 = vmatpush.msra.mxu0 %v484
    %498 = vmatpush.msra.mxu0 %v483
    %499 = vmatpush.msra.mxu0 %v482
    %500 = vmatpush.msra.mxu0 %v481
    %501 = vmatpush.msra.mxu0 %v480
    %502 = vmatpush.msra.mxu0 %v479
    %503 = vmatpush.msra.mxu0 %v478
    %504 = vmatpush.msra.mxu0 %v477
    %505 = vmatpush.msra.mxu0 %v476
    %506 = vmatpush.msra.mxu0 %v475
    %507 = vmatpush.msra.mxu0 %v474
    %508 = vmatpush.msra.mxu0 %v473
    %509 = vmatmul.f32.gmra.mxu0 %v468
    %v510 = vpop.f32.mrf.mxu0
    %v511 = vadd.f32 %v491, %v510
    %512 = vmatmul.f32.gmra.mxu0 %v471
    %v513 = vpop.f32.mrf.mxu0
    %v514 = vadd.f32 %v491, %v513
    %515 = vdwg.mxu0
    %v516 = vadd.f32 %v511, %v186
    %v517 = vadd.f32 %v514, %v187
    %v518 = vld [vmem:[%s11] sm:$0x1]
    %v519 = vld [vmem:[%s12] sm:$0x1]
    %v520 = vsel %vm95, %v516, 0.0
    %521 = vadd.xlane.f32.xlu0 %v520
    %v522 = vpop.xlane.xlu0 %521
    %v523 = vsel %vm95, %v517, 0.0
    %524 = vadd.xlane.f32.xlu0 %v523
    %v525 = vpop.xlane.xlu0 %524
    %v526 = vmul.f32 %v522, %v139
    %v527 = vmul.f32 %v525, %v139
    %v528 = vsub.f32 %v516, %v526
    %v529 = vsub.f32 %v517, %v527
    %v530 = vmul.f32 %v528, %v528
    %v531 = vmul.f32 %v529, %v529
    %v532 = vsel %vm95, %v530, 0.0
    %533 = vadd.xlane.f32.xlu0 %v532
    %v534 = vpop.xlane.xlu0 %533
    %v535 = vsel %vm95, %v531, 0.0
    %536 = vadd.xlane.f32.xlu0 %v535
    %v537 = vpop.xlane.xlu0 %536
    %v538 = vmul.f32 %v534, %v139
    %v539 = vmul.f32 %v537, %v139
    %v540 = vadd.f32 %v538, 1e-12
    %v541 = vadd.f32 %v539, 1e-12
    %v542 = vrsqrt.pop %v540
    %v543 = vmul.f32 %v542, %v540
    %v544 = vmul.f32 %v543, %v542
    %v545 = vmul.f32 0.5, %v544
    %v546 = vsub.f32 1.5, %v545
    %v547 = vmul.f32 %v542, %v546
    %vm548 = vweird.f32 %v540
    %vm549 = vweird.f32 %v542
    %vm550 = vmor %vm548, %vm549
    %v551 = vsel %vm550, %v542, %v547
    %v552 = vrsqrt.pop %v541
    %v553 = vmul.f32 %v552, %v541
    %v554 = vmul.f32 %v553, %v552
    %v555 = vmul.f32 0.5, %v554
    %v556 = vsub.f32 1.5, %v555
    %v557 = vmul.f32 %v552, %v556
    %vm558 = vweird.f32 %v541
    %vm559 = vweird.f32 %v552
    %vm560 = vmor %vm558, %vm559
    %v561 = vsel %vm560, %v552, %v557
    %v562 = vmul.f32 %v528, %v551
    %v563 = vmul.f32 %v529, %v561
    %v565 = vperm.slane %v518, 0
    %v567 = vmul.f32 %v562, %v565
    %v568 = vmul.f32 %v563, %v565
    %v570 = vperm.slane %v519, 0
    %v572 = vadd.f32 %v567, %v570
    %v573 = vadd.f32 %v568, %v570
    %v574 = vld [vmem:[%s13] sm:$0xff]
    %v575 = vld [vmem:[%s13 + $0x8] sm:$0xff]
    %v576 = vld [vmem:[%s13 + $0x10] sm:$0xff]
    %v577 = vld [vmem:[%s13 + $0x18] sm:$0xff]
    %v578 = vld [vmem:[%s13 + $0x20] sm:$0xff]
    %v579 = vld [vmem:[%s13 + $0x28] sm:$0xff]
    %v580 = vld [vmem:[%s13 + $0x30] sm:$0xff]
    %v581 = vld [vmem:[%s13 + $0x38] sm:$0xff]
    %v582 = vld [vmem:[%s13 + $0x40] sm:$0xff]
    %v583 = vld [vmem:[%s13 + $0x48] sm:$0xff]
    %v584 = vld [vmem:[%s13 + $0x50] sm:$0xff]
    %v585 = vld [vmem:[%s13 + $0x58] sm:$0xff]
    %v586 = vld [vmem:[%s13 + $0x60] sm:$0xff]
    %v587 = vld [vmem:[%s13 + $0x68] sm:$0xff]
    %v588 = vld [vmem:[%s13 + $0x70] sm:$0xff]
    %v589 = vld [vmem:[%s13 + $0x78] sm:$0xff]
    %v590 = vld [vmem:[%s14] sm:$0x3]
    %v592 = vperm.slane %v590, 0
    %v593 = vperm.slane %v590, 1
    %v597 = vsel %vm95, %v572, 0
    %v600 = vsel %vm95, %v573, 0
    %602 = vmatpush.msra.mxu0 0.0
    %603 = vmatpush.msra.mxu0 0.0
    %604 = vmatpush.msra.mxu0 0.0
    %605 = vmatpush.msra.mxu0 0.0
    %606 = vmatpush.msra.mxu0 0.0
    %607 = vmatpush.msra.mxu0 0.0
    %608 = vmatpush.msra.mxu0 0.0
    %609 = vmatpush.msra.mxu0 0.0
    %610 = vmatpush.msra.mxu0 %v588
    %611 = vmatpush.msra.mxu0 %v586
    %612 = vmatpush.msra.mxu0 %v584
    %613 = vmatpush.msra.mxu0 %v582
    %614 = vmatpush.msra.mxu0 %v580
    %615 = vmatpush.msra.mxu0 %v578
    %616 = vmatpush.msra.mxu0 %v576
    %617 = vmatpush.msra.mxu0 %v574
    %618 = vmatmul.f32.gmra.mxu0 %v597
    %v619 = vpop.f32.mrf.mxu0
    %v620 = vadd.f32 %v592, %v619
    %621 = vmatmul.f32.gmra.mxu0 %v600
    %v622 = vpop.f32.mrf.mxu0
    %v623 = vadd.f32 %v592, %v622
    %624 = vdwg.mxu0
    %625 = vmatpush.msra.mxu0 0.0
    %626 = vmatpush.msra.mxu0 0.0
    %627 = vmatpush.msra.mxu0 0.0
    %628 = vmatpush.msra.mxu0 0.0
    %629 = vmatpush.msra.mxu0 0.0
    %630 = vmatpush.msra.mxu0 0.0
    %631 = vmatpush.msra.mxu0 0.0
    %632 = vmatpush.msra.mxu0 0.0
    %633 = vmatpush.msra.mxu0 %v589
    %634 = vmatpush.msra.mxu0 %v587
    %635 = vmatpush.msra.mxu0 %v585
    %636 = vmatpush.msra.mxu0 %v583
    %637 = vmatpush.msra.mxu0 %v581
    %638 = vmatpush.msra.mxu0 %v579
    %639 = vmatpush.msra.mxu0 %v577
    %640 = vmatpush.msra.mxu0 %v575
    %641 = vmatmul.f32.gmra.mxu0 %v597
    %v642 = vpop.f32.mrf.mxu0
    %v643 = vadd.f32 %v593, %v642
    %644 = vmatmul.f32.gmra.mxu0 %v600
    %v645 = vpop.f32.mrf.mxu0
    %v646 = vadd.f32 %v593, %v645
    %647 = vdwg.mxu0
    %v648 = vmul.f32 %v620, 0.5
    %v649 = vmul.f32 %v643, 0.5
    %v650 = vmul.f32 %v623, 0.5
    %v651 = vmul.f32 %v646, 0.5
    %v652 = vmul.f32 %v620, 0.70710677
    %v653 = vmul.f32 %v643, 0.70710677
    %v654 = vmul.f32 %v623, 0.70710677
    %v655 = vmul.f32 %v646, 0.70710677
    %v656 = vmul.f32 %v652, %v652
    %v657 = vmin.f32 16.0, %v656
    %v658 = vmul.f32 %v657, 2.1237322e-06
    %v659 = vadd.f32 %v658, 0.00028619796
    %v660 = vmul.f32 %v657, %v659
    %v661 = vadd.f32 %v660, 0.0036580483
    %v662 = vmul.f32 %v657, %v661
    %v663 = vadd.f32 %v662, 0.05243302
    %v664 = vmul.f32 %v657, %v663
    %v665 = vadd.f32 %v664, 0.18741608
    %v666 = vmul.f32 %v657, %v665
    %v667 = vadd.f32 %v666, 1.1283791
    %v668 = vmul.f32 %v652, %v667
    %v669 = vmul.f32 %v657, 3.8918573e-05
    %v670 = vadd.f32 %v669, 0.001143296
    %v671 = vmul.f32 %v657, %v670
    %v672 = vadd.f32 %v671, 0.014752088
    %v673 = vmul.f32 %v657, %v672
    %v674 = vadd.f32 %v673, 0.112945676
    %v675 = vmul.f32 %v657, %v674
    %v676 = vadd.f32 %v675, 0.4994258
    %v677 = vmul.f32 %v657, %v676
    %v678 = vadd.f32 %v677, 1.0
    %v679 = vrcp.pop %v678
    %v680 = vmul.f32 %v678, %v679
    %v681 = vsub.f32 1.0, %v680
    %v682 = vmul.f32 %v679, %v681
    %v683 = vadd.f32 %v679, %v682
    %vm684 = vweird.f32 %v678
    %vm685 = vweird.f32 %v679
    %vm686 = vmor %vm684, %vm685
    %v687 = vsel %vm686, %v679, %v683
    %v688 = vand.u32 2147483647, %v678
    %vm689 = vcmp.eq.f32.partialorder %v688, 8.507059e+37
    %v690 = vand.u32 %v678, 2147483648
    %v691 = vor.u32 1.1754944e-38, %v690
    %v692 = vsel %vm689, %v691, %v687
    %v693 = vmul.f32 %v668, %v692
    %v694 = vmin.f32 %v693, 1.0
    %v695 = vmax.f32 %v694, -1.0
    %v696 = vmul.f32 %v653, %v653
    %v697 = vmin.f32 16.0, %v696
    %v698 = vmul.f32 %v697, 2.1237322e-06
    %v699 = vadd.f32 %v698, 0.00028619796
    %v700 = vmul.f32 %v697, %v699
    %v701 = vadd.f32 %v700, 0.0036580483
    %v702 = vmul.f32 %v697, %v701
    %v703 = vadd.f32 %v702, 0.05243302
    %v704 = vmul.f32 %v697, %v703
    %v705 = vadd.f32 %v704, 0.18741608
    %v706 = vmul.f32 %v697, %v705
    %v707 = vadd.f32 %v706, 1.1283791
    %v708 = vmul.f32 %v653, %v707
    %v709 = vmul.f32 %v697, 3.8918573e-05
    %v710 = vadd.f32 %v709, 0.001143296
    %v711 = vmul.f32 %v697, %v710
    %v712 = vadd.f32 %v711, 0.014752088
    %v713 = vmul.f32 %v697, %v712
    %v714 = vadd.f32 %v713, 0.112945676
    %v715 = vmul.f32 %v697, %v714
    %v716 = vadd.f32 %v715, 0.4994258
    %v717 = vmul.f32 %v697, %v716
    %v718 = vadd.f32 %v717, 1.0
    %v719 = vrcp.pop %v718
    %v720 = vmul.f32 %v718, %v719
    %v721 = vsub.f32 1.0, %v720
    %v722 = vmul.f32 %v719, %v721
    %v723 = vadd.f32 %v719, %v722
    %vm724 = vweird.f32 %v718
    %vm725 = vweird.f32 %v719
    %vm726 = vmor %vm724, %vm725
    %v727 = vsel %vm726, %v719, %v723
    %v728 = vand.u32 2147483647, %v718
    %vm729 = vcmp.eq.f32.partialorder %v728, 8.507059e+37
    %v730 = vand.u32 %v718, 2147483648
    %v731 = vor.u32 1.1754944e-38, %v730
    %v732 = vsel %vm729, %v731, %v727
    %v733 = vmul.f32 %v708, %v732
    %v734 = vmin.f32 %v733, 1.0
    %v735 = vmax.f32 %v734, -1.0
    %v736 = vmul.f32 %v654, %v654
    %v737 = vmin.f32 16.0, %v736
    %v738 = vmul.f32 %v737, 2.1237322e-06
    %v739 = vadd.f32 %v738, 0.00028619796
    %v740 = vmul.f32 %v737, %v739
    %v741 = vadd.f32 %v740, 0.0036580483
    %v742 = vmul.f32 %v737, %v741
    %v743 = vadd.f32 %v742, 0.05243302
    %v744 = vmul.f32 %v737, %v743
    %v745 = vadd.f32 %v744, 0.18741608
    %v746 = vmul.f32 %v737, %v745
    %v747 = vadd.f32 %v746, 1.1283791
    %v748 = vmul.f32 %v654, %v747
    %v749 = vmul.f32 %v737, 3.8918573e-05
    %v750 = vadd.f32 %v749, 0.001143296
    %v751 = vmul.f32 %v737, %v750
    %v752 = vadd.f32 %v751, 0.014752088
    %v753 = vmul.f32 %v737, %v752
    %v754 = vadd.f32 %v753, 0.112945676
    %v755 = vmul.f32 %v737, %v754
    %v756 = vadd.f32 %v755, 0.4994258
    %v757 = vmul.f32 %v737, %v756
    %v758 = vadd.f32 %v757, 1.0
    %v759 = vrcp.pop %v758
    %v760 = vmul.f32 %v758, %v759
    %v761 = vsub.f32 1.0, %v760
    %v762 = vmul.f32 %v759, %v761
    %v763 = vadd.f32 %v759, %v762
    %vm764 = vweird.f32 %v758
    %vm765 = vweird.f32 %v759
    %vm766 = vmor %vm764, %vm765
    %v767 = vsel %vm766, %v759, %v763
    %v768 = vand.u32 2147483647, %v758
    %vm769 = vcmp.eq.f32.partialorder %v768, 8.507059e+37
    %v770 = vand.u32 %v758, 2147483648
    %v771 = vor.u32 1.1754944e-38, %v770
    %v772 = vsel %vm769, %v771, %v767
    %v773 = vmul.f32 %v748, %v772
    %v774 = vmin.f32 %v773, 1.0
    %v775 = vmax.f32 %v774, -1.0
    %v776 = vmul.f32 %v655, %v655
    %v777 = vmin.f32 16.0, %v776
    %v778 = vmul.f32 %v777, 2.1237322e-06
    %v779 = vadd.f32 %v778, 0.00028619796
    %v780 = vmul.f32 %v777, %v779
    %v781 = vadd.f32 %v780, 0.0036580483
    %v782 = vmul.f32 %v777, %v781
    %v783 = vadd.f32 %v782, 0.05243302
    %v784 = vmul.f32 %v777, %v783
    %v785 = vadd.f32 %v784, 0.18741608
    %v786 = vmul.f32 %v777, %v785
    %v787 = vadd.f32 %v786, 1.1283791
    %v788 = vmul.f32 %v655, %v787
    %v789 = vmul.f32 %v777, 3.8918573e-05
    %v790 = vadd.f32 %v789, 0.001143296
    %v791 = vmul.f32 %v777, %v790
    %v792 = vadd.f32 %v791, 0.014752088
    %v793 = vmul.f32 %v777, %v792
    %v794 = vadd.f32 %v793, 0.112945676
    %v795 = vmul.f32 %v777, %v794
    %v796 = vadd.f32 %v795, 0.4994258
    %v797 = vmul.f32 %v777, %v796
    %v798 = vadd.f32 %v797, 1.0
    %v799 = vrcp.pop %v798
    %v800 = vmul.f32 %v798, %v799
    %v801 = vsub.f32 1.0, %v800
    %v802 = vmul.f32 %v799, %v801
    %v803 = vadd.f32 %v799, %v802
    %vm804 = vweird.f32 %v798
    %vm805 = vweird.f32 %v799
    %vm806 = vmor %vm804, %vm805
    %v807 = vsel %vm806, %v799, %v803
    %v808 = vand.u32 2147483647, %v798
    %vm809 = vcmp.eq.f32.partialorder %v808, 8.507059e+37
    %v810 = vand.u32 %v798, 2147483648
    %v811 = vor.u32 1.1754944e-38, %v810
    %v812 = vsel %vm809, %v811, %v807
    %v813 = vmul.f32 %v788, %v812
    %v814 = vmin.f32 %v813, 1.0
    %v815 = vmax.f32 %v814, -1.0
    %v816 = vadd.f32 %v695, 1.0
    %v817 = vadd.f32 %v735, 1.0
    %v818 = vadd.f32 %v775, 1.0
    %v819 = vadd.f32 %v815, 1.0
    %v820 = vmul.f32 %v648, %v816
    %v821 = vmul.f32 %v649, %v817
    %v822 = vmul.f32 %v650, %v818
    %v823 = vmul.f32 %v651, %v819
    %v824 = vld [vmem:[%s15] sm:$0xff]
    %v825 = vld [vmem:[%s15 + $0x8] sm:$0xff]
    %v826 = vld [vmem:[%s15 + $0x10] sm:$0xff]
    %v827 = vld [vmem:[%s15 + $0x18] sm:$0xff]
    %v828 = vld [vmem:[%s15 + $0x20] sm:$0xff]
    %v829 = vld [vmem:[%s15 + $0x28] sm:$0xff]
    %v830 = vld [vmem:[%s15 + $0x30] sm:$0xff]
    %v831 = vld [vmem:[%s15 + $0x38] sm:$0xff]
    %v832 = vld [vmem:[%s15 + $0x40] sm:$0xff]
    %v833 = vld [vmem:[%s15 + $0x48] sm:$0xff]
    %v834 = vld [vmem:[%s15 + $0x50] sm:$0xff]
    %v835 = vld [vmem:[%s15 + $0x58] sm:$0xff]
    %v836 = vld [vmem:[%s15 + $0x60] sm:$0xff]
    %v837 = vld [vmem:[%s15 + $0x68] sm:$0xff]
    %v838 = vld [vmem:[%s15 + $0x70] sm:$0xff]
    %v839 = vld [vmem:[%s15 + $0x78] sm:$0xff]
    %v840 = vld [vmem:[%s15 + $0x80] sm:$0xff]
    %v841 = vld [vmem:[%s15 + $0x88] sm:$0xff]
    %v842 = vld [vmem:[%s15 + $0x90] sm:$0xff]
    %v843 = vld [vmem:[%s15 + $0x98] sm:$0xff]
    %v844 = vld [vmem:[%s15 + $0xa0] sm:$0xff]
    %v845 = vld [vmem:[%s15 + $0xa8] sm:$0xff]
    %v846 = vld [vmem:[%s15 + $0xb0] sm:$0xff]
    %v847 = vld [vmem:[%s15 + $0xb8] sm:$0xff]
    %v848 = vld [vmem:[%s15 + $0xc0] sm:$0xff]
    %v849 = vld [vmem:[%s15 + $0xc8] sm:$0xff]
    %v850 = vld [vmem:[%s15 + $0xd0] sm:$0xff]
    %v851 = vld [vmem:[%s15 + $0xd8] sm:$0xff]
    %v852 = vld [vmem:[%s15 + $0xe0] sm:$0xff]
    %v853 = vld [vmem:[%s15 + $0xe8] sm:$0xff]
    %v854 = vld [vmem:[%s15 + $0xf0] sm:$0xff]
    %v855 = vld [vmem:[%s15 + $0xf8] sm:$0xff]
    %v856 = vld [vmem:[%s16] sm:$0x1]
    %v858 = vperm.slane %v856, 0
    %860 = vmatpush.msra.mxu0 %v839
    %861 = vmatpush.msra.mxu0 %v838
    %862 = vmatpush.msra.mxu0 %v837
    %863 = vmatpush.msra.mxu0 %v836
    %864 = vmatpush.msra.mxu0 %v835
    %865 = vmatpush.msra.mxu0 %v834
    %866 = vmatpush.msra.mxu0 %v833
    %867 = vmatpush.msra.mxu0 %v832
    %868 = vmatpush.msra.mxu0 %v831
    %869 = vmatpush.msra.mxu0 %v830
    %870 = vmatpush.msra.mxu0 %v829
    %871 = vmatpush.msra.mxu0 %v828
    %872 = vmatpush.msra.mxu0 %v827
    %873 = vmatpush.msra.mxu0 %v826
    %874 = vmatpush.msra.mxu0 %v825
    %875 = vmatpush.msra.mxu0 %v824
    %876 = vmatmul.f32.gmra.mxu0 %v820
    %v877 = vpop.f32.mrf.mxu0
    %v878 = vadd.f32 %v858, %v877
    %879 = vmatmul.f32.gmra.mxu0 %v822
    %v880 = vpop.f32.mrf.mxu0
    %v881 = vadd.f32 %v858, %v880
    %882 = vdwg.mxu0
    %883 = vmatpush.msra.mxu0 %v855
    %884 = vmatpush.msra.mxu0 %v854
    %885 = vmatpush.msra.mxu0 %v853
    %886 = vmatpush.msra.mxu0 %v852
    %887 = vmatpush.msra.mxu0 %v851
    %888 = vmatpush.msra.mxu0 %v850
    %889 = vmatpush.msra.mxu0 %v849
    %890 = vmatpush.msra.mxu0 %v848
    %891 = vmatpush.msra.mxu0 %v847
    %892 = vmatpush.msra.mxu0 %v846
    %893 = vmatpush.msra.mxu0 %v845
    %894 = vmatpush.msra.mxu0 %v844
    %895 = vmatpush.msra.mxu0 %v843
    %896 = vmatpush.msra.mxu0 %v842
    %897 = vmatpush.msra.mxu0 %v841
    %898 = vmatpush.msra.mxu0 %v840
    %899 = vmatmul.f32.gmra.mxu0 %v821
    %v900 = vpop.f32.mrf.mxu0
    %v901 = vadd.f32 %v878, %v900
    %902 = vmatmul.f32.gmra.mxu0 %v823
    %v903 = vpop.f32.mrf.mxu0
    %v904 = vadd.f32 %v881, %v903
    %905 = vdwg.mxu0
    %v906 = vadd.f32 %v901, %v572
    %v907 = vadd.f32 %v904, %v573
    %v908 = vld [vmem:[%s17] sm:$0x1]
    %v909 = vld [vmem:[%s18] sm:$0x1]
    %v910 = vsel %vm95, %v906, 0.0
    %911 = vadd.xlane.f32.xlu0 %v910
    %v912 = vpop.xlane.xlu0 %911
    %v913 = vsel %vm95, %v907, 0.0
    %914 = vadd.xlane.f32.xlu0 %v913
    %v915 = vpop.xlane.xlu0 %914
    %v916 = vmul.f32 %v912, %v139
    %v917 = vmul.f32 %v915, %v139
    %v918 = vsub.f32 %v906, %v916
    %v919 = vsub.f32 %v907, %v917
    %v920 = vmul.f32 %v918, %v918
    %v921 = vmul.f32 %v919, %v919
    %v922 = vsel %vm95, %v920, 0.0
    %923 = vadd.xlane.f32.xlu0 %v922
    %v924 = vpop.xlane.xlu0 %923
    %v925 = vsel %vm95, %v921, 0.0
    %926 = vadd.xlane.f32.xlu0 %v925
    %v927 = vpop.xlane.xlu0 %926
    %v928 = vmul.f32 %v924, %v139
    %v929 = vmul.f32 %v927, %v139
    %v930 = vadd.f32 %v928, 1e-12
    %v931 = vadd.f32 %v929, 1e-12
    %v932 = vrsqrt.pop %v930
    %v933 = vmul.f32 %v932, %v930
    %v934 = vmul.f32 %v933, %v932
    %v935 = vmul.f32 0.5, %v934
    %v936 = vsub.f32 1.5, %v935
    %v937 = vmul.f32 %v932, %v936
    %vm938 = vweird.f32 %v930
    %vm939 = vweird.f32 %v932
    %vm940 = vmor %vm938, %vm939
    %v941 = vsel %vm940, %v932, %v937
    %v942 = vrsqrt.pop %v931
    %v943 = vmul.f32 %v942, %v931
    %v944 = vmul.f32 %v943, %v942
    %v945 = vmul.f32 0.5, %v944
    %v946 = vsub.f32 1.5, %v945
    %v947 = vmul.f32 %v942, %v946
    %vm948 = vweird.f32 %v931
    %vm949 = vweird.f32 %v942
    %vm950 = vmor %vm948, %vm949
    %v951 = vsel %vm950, %v942, %v947
    %v952 = vmul.f32 %v918, %v941
    %v953 = vmul.f32 %v919, %v951
    %v955 = vperm.slane %v908, 0
    %v957 = vmul.f32 %v952, %v955
    %v958 = vmul.f32 %v953, %v955
    %v960 = vperm.slane %v909, 0
    %v962 = vadd.f32 %v957, %v960
    %v963 = vadd.f32 %v958, %v960
    %s964 = scalar_lea.vmem %s7, 192
    %v965 = vld [vmem:[%s964] sm:$0xff]
    %v966 = vld [vmem:[%s964 + $0x8] sm:$0xff]
    %v967 = vld [vmem:[%s964 + $0x10] sm:$0xff]
    %v968 = vld [vmem:[%s964 + $0x18] sm:$0xff]
    %v969 = vld [vmem:[%s964 + $0x20] sm:$0xff]
    %v970 = vld [vmem:[%s964 + $0x28] sm:$0xff]
    %v971 = vld [vmem:[%s964 + $0x30] sm:$0xff]
    %v972 = vld [vmem:[%s964 + $0x38] sm:$0xff]
    %v973 = vld [vmem:[%s964 + $0x40] sm:$0xff]
    %v974 = vld [vmem:[%s964 + $0x48] sm:$0xff]
    %v975 = vld [vmem:[%s964 + $0x50] sm:$0xff]
    %v976 = vld [vmem:[%s964 + $0x58] sm:$0xff]
    %v977 = vld [vmem:[%s964 + $0x60] sm:$0xff]
    %v978 = vld [vmem:[%s964 + $0x68] sm:$0xff]
    %v979 = vld [vmem:[%s964 + $0x70] sm:$0xff]
    %v980 = vld [vmem:[%s964 + $0x78] sm:$0xff]
    %v981 = vld [vmem:[%s964 + $0x80] sm:$0xff]
    %v982 = vld [vmem:[%s964 + $0x88] sm:$0xff]
    %v983 = vld [vmem:[%s964 + $0x90] sm:$0xff]
    %v984 = vld [vmem:[%s964 + $0x98] sm:$0xff]
    %v985 = vld [vmem:[%s964 + $0xa0] sm:$0xff]
    %v986 = vld [vmem:[%s964 + $0xa8] sm:$0xff]
    %v987 = vld [vmem:[%s964 + $0xb0] sm:$0xff]
    %v988 = vld [vmem:[%s964 + $0xb8] sm:$0xff]
    %s989 = scalar_lea.vmem %s8, 3
    %v990 = vld [vmem:[%s989] sm:$0x7]
    %v992 = vperm.slane %v990, 0
    %v993 = vperm.slane %v990, 1
    %v994 = vperm.slane %v990, 2
    %v999 = vsel %vm95, %v962, 0
    %v1002 = vsel %vm95, %v963, 0
    %1004 = vmatpush.msra.mxu0 0.0
    %1005 = vmatpush.msra.mxu0 0.0
    %1006 = vmatpush.msra.mxu0 0.0
    %1007 = vmatpush.msra.mxu0 0.0
    %1008 = vmatpush.msra.mxu0 0.0
    %1009 = vmatpush.msra.mxu0 0.0
    %1010 = vmatpush.msra.mxu0 0.0
    %1011 = vmatpush.msra.mxu0 0.0
    %1012 = vmatpush.msra.mxu0 %v986
    %1013 = vmatpush.msra.mxu0 %v983
    %1014 = vmatpush.msra.mxu0 %v980
    %1015 = vmatpush.msra.mxu0 %v977
    %1016 = vmatpush.msra.mxu0 %v974
    %1017 = vmatpush.msra.mxu0 %v971
    %1018 = vmatpush.msra.mxu0 %v968
    %1019 = vmatpush.msra.mxu0 %v965
    %1020 = vmatmul.f32.gmra.mxu0 %v999
    %v1021 = vpop.f32.mrf.mxu0
    %v1022 = vadd.f32 %v992, %v1021
    %1023 = vmatmul.f32.gmra.mxu0 %v1002
    %v1024 = vpop.f32.mrf.mxu0
    %v1025 = vadd.f32 %v992, %v1024
    %1026 = vdwg.mxu0
    %1027 = vmatpush.msra.mxu0 0.0
    %1028 = vmatpush.msra.mxu0 0.0
    %1029 = vmatpush.msra.mxu0 0.0
    %1030 = vmatpush.msra.mxu0 0.0
    %1031 = vmatpush.msra.mxu0 0.0
    %1032 = vmatpush.msra.mxu0 0.0
    %1033 = vmatpush.msra.mxu0 0.0
    %1034 = vmatpush.msra.mxu0 0.0
    %1035 = vmatpush.msra.mxu0 %v987
    %1036 = vmatpush.msra.mxu0 %v984
    %1037 = vmatpush.msra.mxu0 %v981
    %1038 = vmatpush.msra.mxu0 %v978
    %1039 = vmatpush.msra.mxu0 %v975
    %1040 = vmatpush.msra.mxu0 %v972
    %1041 = vmatpush.msra.mxu0 %v969
    %1042 = vmatpush.msra.mxu0 %v966
    %1043 = vmatmul.f32.gmra.mxu0 %v999
    %v1044 = vpop.f32.mrf.mxu0
    %v1045 = vadd.f32 %v993, %v1044
    %1046 = vmatmul.f32.gmra.mxu0 %v1002
    %v1047 = vpop.f32.mrf.mxu0
    %v1048 = vadd.f32 %v993, %v1047
    %1049 = vdwg.mxu0
    %1050 = vmatpush.msra.mxu0 0.0
    %1051 = vmatpush.msra.mxu0 0.0
    %1052 = vmatpush.msra.mxu0 0.0
    %1053 = vmatpush.msra.mxu0 0.0
    %1054 = vmatpush.msra.mxu0 0.0
    %1055 = vmatpush.msra.mxu0 0.0
    %1056 = vmatpush.msra.mxu0 0.0
    %1057 = vmatpush.msra.mxu0 0.0
    %1058 = vmatpush.msra.mxu0 %v988
    %1059 = vmatpush.msra.mxu0 %v985
    %1060 = vmatpush.msra.mxu0 %v982
    %1061 = vmatpush.msra.mxu0 %v979
    %1062 = vmatpush.msra.mxu0 %v976
    %1063 = vmatpush.msra.mxu0 %v973
    %1064 = vmatpush.msra.mxu0 %v970
    %1065 = vmatpush.msra.mxu0 %v967
    %1066 = vmatmul.f32.gmra.mxu0 %v999
    %v1067 = vpop.f32.mrf.mxu0
    %v1068 = vadd.f32 %v994, %v1067
    %1069 = vmatmul.f32.gmra.mxu0 %v1002
    %v1070 = vpop.f32.mrf.mxu0
    %v1071 = vadd.f32 %v994, %v1070
    %1072 = vdwg.mxu0
    %v1073 = vmul.f32 %v1022, %v203
    %v1074 = vmul.f32 %v1025, %v203
    %1075 = vmatpush.xpose.msra.mxu0 0.0
    %1076 = vmatpush.xpose.msra.mxu0 0.0
    %1077 = vmatpush.xpose.msra.mxu0 0.0
    %1078 = vmatpush.xpose.msra.mxu0 0.0
    %1079 = vmatpush.xpose.msra.mxu0 0.0
    %1080 = vmatpush.xpose.msra.mxu0 0.0
    %1081 = vmatpush.xpose.msra.mxu0 0.0
    %1082 = vmatpush.xpose.msra.mxu0 0.0
    %1083 = vmatpush.xpose.msra.mxu0 0.0
    %1084 = vmatpush.xpose.msra.mxu0 0.0
    %1085 = vmatpush.xpose.msra.mxu0 0.0
    %1086 = vmatpush.xpose.msra.mxu0 0.0
    %1087 = vmatpush.xpose.msra.mxu0 0.0
    %1088 = vmatpush.xpose.msra.mxu0 0.0
    %1089 = vmatpush.xpose.msra.mxu0 %v1048
    %1090 = vmatpush.xpose.msra.mxu0 %v1045
    %1091 = vmatmul.f32.gmra.mxu0 %v1073
    %v1092 = vpop.f32.mrf.mxu0
    %v1093 = vadd.f32 %v197, %v1092
    %1094 = vmatmul.f32.gmra.mxu0 %v1074
    %v1095 = vpop.f32.mrf.mxu0
    %v1096 = vadd.f32 %v198, %v1095
    %1097 = vdwg.mxu0
    %v1098 = vsel %vm341, %v1093, -inf
    %1099 = vmax.xlane.f32.xlu0 %v1098
    %v1100 = vpop.xlane.xlu0 %1099
    %v1101 = vsel %vm341, %v1096, -inf
    %1102 = vmax.xlane.f32.xlu0 %v1101
    %v1103 = vpop.xlane.xlu0 %1102
    %v1104 = vsub.f32 %v1093, %v1100
    %v1105 = vsub.f32 %v1096, %v1103
    %v1106 = vmul.f32 %v1104, 1.442695
    %v1107 = vpow.pop %v1106
    %v1108 = vmul.f32 %v1105, 1.442695
    %v1109 = vpow.pop %v1108
    %v1110 = vsel %vm341, %v1107, 0.0
    %1111 = vadd.xlane.f32.xlu0 %v1110
    %v1112 = vpop.xlane.xlu0 %1111
    %v1113 = vsel %vm341, %v1109, 0.0
    %1114 = vadd.xlane.f32.xlu0 %v1113
    %v1115 = vpop.xlane.xlu0 %1114
    %v1116 = vrcp.pop %v1112
    %v1117 = vrcp.pop %v1115
    %v1118 = vmul.f32 %v1107, %v1116
    %v1119 = vmul.f32 %v1109, %v1117
    %v1120 = vmul.f32 %v1068, %v203
    %v1121 = vmul.f32 %v1071, %v203
    %v1122 = vmul.f32 %v1022, %v208
    %v1123 = vmul.f32 %v1025, %v208
    %1124 = vmatpush.xpose.msra.mxu0 0.0
    %1125 = vmatpush.xpose.msra.mxu0 0.0
    %1126 = vmatpush.xpose.msra.mxu0 0.0
    %1127 = vmatpush.xpose.msra.mxu0 0.0
    %1128 = vmatpush.xpose.msra.mxu0 0.0
    %1129 = vmatpush.xpose.msra.mxu0 0.0
    %1130 = vmatpush.xpose.msra.mxu0 0.0
    %1131 = vmatpush.xpose.msra.mxu0 0.0
    %1132 = vmatpush.xpose.msra.mxu0 0.0
    %1133 = vmatpush.xpose.msra.mxu0 0.0
    %1134 = vmatpush.xpose.msra.mxu0 0.0
    %1135 = vmatpush.xpose.msra.mxu0 0.0
    %1136 = vmatpush.xpose.msra.mxu0 0.0
    %1137 = vmatpush.xpose.msra.mxu0 0.0
    %1138 = vmatpush.xpose.msra.mxu0 %v1048
    %1139 = vmatpush.xpose.msra.mxu0 %v1045
    %1140 = vmatmul.f32.gmra.mxu0 %v1122
    %v1141 = vpop.f32.mrf.mxu0
    %v1142 = vadd.f32 %v197, %v1141
    %1143 = vmatmul.f32.gmra.mxu0 %v1123
    %v1144 = vpop.f32.mrf.mxu0
    %v1145 = vadd.f32 %v198, %v1144
    %1146 = vdwg.mxu0
    %v1147 = vsel %vm341, %v1142, -inf
    %1148 = vmax.xlane.f32.xlu0 %v1147
    %v1149 = vpop.xlane.xlu0 %1148
    %v1150 = vsel %vm341, %v1145, -inf
    %1151 = vmax.xlane.f32.xlu0 %v1150
    %v1152 = vpop.xlane.xlu0 %1151
    %v1153 = vsub.f32 %v1142, %v1149
    %v1154 = vsub.f32 %v1145, %v1152
    %v1155 = vmul.f32 %v1153, 1.442695
    %v1156 = vpow.pop %v1155
    %v1157 = vmul.f32 %v1154, 1.442695
    %v1158 = vpow.pop %v1157
    %v1159 = vsel %vm341, %v1156, 0.0
    %1160 = vadd.xlane.f32.xlu0 %v1159
    %v1161 = vpop.xlane.xlu0 %1160
    %v1162 = vsel %vm341, %v1158, 0.0
    %1163 = vadd.xlane.f32.xlu0 %v1162
    %v1164 = vpop.xlane.xlu0 %1163
    %v1165 = vrcp.pop %v1161
    %v1166 = vrcp.pop %v1164
    %v1167 = vmul.f32 %v1156, %v1165
    %v1168 = vmul.f32 %v1158, %v1166
    %v1169 = vmul.f32 %v1068, %v208
    %v1170 = vmul.f32 %v1071, %v208
    %v1172 = vsel %vm341, %v1167, 0
    %v1175 = vsel %vm341, %v1168, 0
    %1177 = vmatpush.msra.mxu0 0.0
    %1178 = vmatpush.msra.mxu0 0.0
    %1179 = vmatpush.msra.mxu0 0.0
    %1180 = vmatpush.msra.mxu0 0.0
    %1181 = vmatpush.msra.mxu0 0.0
    %1182 = vmatpush.msra.mxu0 0.0
    %1183 = vmatpush.msra.mxu0 0.0
    %1184 = vmatpush.msra.mxu0 0.0
    %1185 = vmatpush.msra.mxu0 0.0
    %1186 = vmatpush.msra.mxu0 0.0
    %1187 = vmatpush.msra.mxu0 0.0
    %1188 = vmatpush.msra.mxu0 0.0
    %1189 = vmatpush.msra.mxu0 0.0
    %1190 = vmatpush.msra.mxu0 0.0
    %1191 = vmatpush.msra.mxu0 %v1170
    %1192 = vmatpush.msra.mxu0 %v1169
    %1193 = vmatmul.f32.gmra.mxu0 %v1172
    %v1194 = vpop.f32.mrf.mxu0
    %v1195 = vadd.f32 0.0, %v1194
    %1196 = vmatmul.f32.gmra.mxu0 %v1175
    %v1197 = vpop.f32.mrf.mxu0
    %v1198 = vadd.f32 0.0, %v1197
    %1199 = vdwg.mxu0
    %v1201 = vsel %vm341, %v1118, 0
    %v1204 = vsel %vm341, %v1119, 0
    %1206 = vmatpush.msra.mxu0 0.0
    %1207 = vmatpush.msra.mxu0 0.0
    %1208 = vmatpush.msra.mxu0 0.0
    %1209 = vmatpush.msra.mxu0 0.0
    %1210 = vmatpush.msra.mxu0 0.0
    %1211 = vmatpush.msra.mxu0 0.0
    %1212 = vmatpush.msra.mxu0 0.0
    %1213 = vmatpush.msra.mxu0 0.0
    %1214 = vmatpush.msra.mxu0 0.0
    %1215 = vmatpush.msra.mxu0 0.0
    %1216 = vmatpush.msra.mxu0 0.0
    %1217 = vmatpush.msra.mxu0 0.0
    %1218 = vmatpush.msra.mxu0 0.0
    %1219 = vmatpush.msra.mxu0 0.0
    %1220 = vmatpush.msra.mxu0 %v1121
    %1221 = vmatpush.msra.mxu0 %v1120
    %1222 = vmatmul.f32.gmra.mxu0 %v1201
    %v1223 = vpop.f32.mrf.mxu0
    %v1224 = vadd.f32 %v1195, %v1223
    %1225 = vmatmul.f32.gmra.mxu0 %v1204
    %v1226 = vpop.f32.mrf.mxu0
    %v1227 = vadd.f32 %v1198, %v1226
    %1228 = vdwg.mxu0
    %s1229 = scalar_lea.vmem %s9, 128
    %v1230 = vld [vmem:[%s1229] sm:$0xff]
    %v1231 = vld [vmem:[%s1229 + $0x8] sm:$0xff]
    %v1232 = vld [vmem:[%s1229 + $0x10] sm:$0xff]
    %v1233 = vld [vmem:[%s1229 + $0x18] sm:$0xff]
    %v1234 = vld [vmem:[%s1229 + $0x20] sm:$0xff]
    %v1235 = vld [vmem:[%s1229 + $0x28] sm:$0xff]
    %v1236 = vld [vmem:[%s1229 + $0x30] sm:$0xff]
    %v1237 = vld [vmem:[%s1229 + $0x38] sm:$0xff]
    %v1238 = vld [vmem:[%s1229 + $0x40] sm:$0xff]
    %v1239 = vld [vmem:[%s1229 + $0x48] sm:$0xff]
    %v1240 = vld [vmem:[%s1229 + $0x50] sm:$0xff]
    %v1241 = vld [vmem:[%s1229 + $0x58] sm:$0xff]
    %v1242 = vld [vmem:[%s1229 + $0x60] sm:$0xff]
    %v1243 = vld [vmem:[%s1229 + $0x68] sm:$0xff]
    %v1244 = vld [vmem:[%s1229 + $0x70] sm:$0xff]
    %v1245 = vld [vmem:[%s1229 + $0x78] sm:$0xff]
    %s1246 = scalar_lea.vmem %s10, 1
    %v1247 = vld [vmem:[%s1246] sm:$0x1]
    %v1249 = vperm.slane %v1247, 0
    %1251 = vmatpush.msra.mxu0 %v1245
    %1252 = vmatpush.msra.mxu0 %v1244
    %1253 = vmatpush.msra.mxu0 %v1243
    %1254 = vmatpush.msra.mxu0 %v1242
    %1255 = vmatpush.msra.mxu0 %v1241
    %1256 = vmatpush.msra.mxu0 %v1240
    %1257 = vmatpush.msra.mxu0 %v1239
    %1258 = vmatpush.msra.mxu0 %v1238
    %1259 = vmatpush.msra.mxu0 %v1237
    %1260 = vmatpush.msra.mxu0 %v1236
    %1261 = vmatpush.msra.mxu0 %v1235
    %1262 = vmatpush.msra.mxu0 %v1234
    %1263 = vmatpush.msra.mxu0 %v1233
    %1264 = vmatpush.msra.mxu0 %v1232
    %1265 = vmatpush.msra.mxu0 %v1231
    %1266 = vmatpush.msra.mxu0 %v1230
    %1267 = vmatmul.f32.gmra.mxu0 %v1224
    %v1268 = vpop.f32.mrf.mxu0
    %v1269 = vadd.f32 %v1249, %v1268
    %1270 = vmatmul.f32.gmra.mxu0 %v1227
    %v1271 = vpop.f32.mrf.mxu0
    %v1272 = vadd.f32 %v1249, %v1271
    %1273 = vdwg.mxu0
    %v1274 = vadd.f32 %v1269, %v962
    %v1275 = vadd.f32 %v1272, %v963
    %s1276 = scalar_lea.vmem %s11, 1
    %v1277 = vld [vmem:[%s1276] sm:$0x1]
    %s1278 = scalar_lea.vmem %s12, 1
    %v1279 = vld [vmem:[%s1278] sm:$0x1]
    %v1280 = vsel %vm95, %v1274, 0.0
    %1281 = vadd.xlane.f32.xlu0 %v1280
    %v1282 = vpop.xlane.xlu0 %1281
    %v1283 = vsel %vm95, %v1275, 0.0
    %1284 = vadd.xlane.f32.xlu0 %v1283
    %v1285 = vpop.xlane.xlu0 %1284
    %v1286 = vmul.f32 %v1282, %v139
    %v1287 = vmul.f32 %v1285, %v139
    %v1288 = vsub.f32 %v1274, %v1286
    %v1289 = vsub.f32 %v1275, %v1287
    %v1290 = vmul.f32 %v1288, %v1288
    %v1291 = vmul.f32 %v1289, %v1289
    %v1292 = vsel %vm95, %v1290, 0.0
    %1293 = vadd.xlane.f32.xlu0 %v1292
    %v1294 = vpop.xlane.xlu0 %1293
    %v1295 = vsel %vm95, %v1291, 0.0
    %1296 = vadd.xlane.f32.xlu0 %v1295
    %v1297 = vpop.xlane.xlu0 %1296
    %v1298 = vmul.f32 %v1294, %v139
    %v1299 = vmul.f32 %v1297, %v139
    %v1300 = vadd.f32 %v1298, 1e-12
    %v1301 = vadd.f32 %v1299, 1e-12
    %v1302 = vrsqrt.pop %v1300
    %v1303 = vmul.f32 %v1302, %v1300
    %v1304 = vmul.f32 %v1303, %v1302
    %v1305 = vmul.f32 0.5, %v1304
    %v1306 = vsub.f32 1.5, %v1305
    %v1307 = vmul.f32 %v1302, %v1306
    %vm1308 = vweird.f32 %v1300
    %vm1309 = vweird.f32 %v1302
    %vm1310 = vmor %vm1308, %vm1309
    %v1311 = vsel %vm1310, %v1302, %v1307
    %v1312 = vrsqrt.pop %v1301
    %v1313 = vmul.f32 %v1312, %v1301
    %v1314 = vmul.f32 %v1313, %v1312
    %v1315 = vmul.f32 0.5, %v1314
    %v1316 = vsub.f32 1.5, %v1315
    %v1317 = vmul.f32 %v1312, %v1316
    %vm1318 = vweird.f32 %v1301
    %vm1319 = vweird.f32 %v1312
    %vm1320 = vmor %vm1318, %vm1319
    %v1321 = vsel %vm1320, %v1312, %v1317
    %v1322 = vmul.f32 %v1288, %v1311
    %v1323 = vmul.f32 %v1289, %v1321
    %v1325 = vperm.slane %v1277, 0
    %v1327 = vmul.f32 %v1322, %v1325
    %v1328 = vmul.f32 %v1323, %v1325
    %v1330 = vperm.slane %v1279, 0
    %v1332 = vadd.f32 %v1327, %v1330
    %v1333 = vadd.f32 %v1328, %v1330
    %s1334 = scalar_lea.vmem %s13, 128
    %v1335 = vld [vmem:[%s1334] sm:$0xff]
    %v1336 = vld [vmem:[%s1334 + $0x8] sm:$0xff]
    %v1337 = vld [vmem:[%s1334 + $0x10] sm:$0xff]
    %v1338 = vld [vmem:[%s1334 + $0x18] sm:$0xff]
    %v1339 = vld [vmem:[%s1334 + $0x20] sm:$0xff]
    %v1340 = vld [vmem:[%s1334 + $0x28] sm:$0xff]
    %v1341 = vld [vmem:[%s1334 + $0x30] sm:$0xff]
    %v1342 = vld [vmem:[%s1334 + $0x38] sm:$0xff]
    %v1343 = vld [vmem:[%s1334 + $0x40] sm:$0xff]
    %v1344 = vld [vmem:[%s1334 + $0x48] sm:$0xff]
    %v1345 = vld [vmem:[%s1334 + $0x50] sm:$0xff]
    %v1346 = vld [vmem:[%s1334 + $0x58] sm:$0xff]
    %v1347 = vld [vmem:[%s1334 + $0x60] sm:$0xff]
    %v1348 = vld [vmem:[%s1334 + $0x68] sm:$0xff]
    %v1349 = vld [vmem:[%s1334 + $0x70] sm:$0xff]
    %v1350 = vld [vmem:[%s1334 + $0x78] sm:$0xff]
    %s1351 = scalar_lea.vmem %s14, 2
    %v1352 = vld [vmem:[%s1351] sm:$0x3]
    %v1354 = vperm.slane %v1352, 0
    %v1355 = vperm.slane %v1352, 1
    %v1359 = vsel %vm95, %v1332, 0
    %v1362 = vsel %vm95, %v1333, 0
    %1364 = vmatpush.msra.mxu0 0.0
    %1365 = vmatpush.msra.mxu0 0.0
    %1366 = vmatpush.msra.mxu0 0.0
    %1367 = vmatpush.msra.mxu0 0.0
    %1368 = vmatpush.msra.mxu0 0.0
    %1369 = vmatpush.msra.mxu0 0.0
    %1370 = vmatpush.msra.mxu0 0.0
    %1371 = vmatpush.msra.mxu0 0.0
    %1372 = vmatpush.msra.mxu0 %v1349
    %1373 = vmatpush.msra.mxu0 %v1347
    %1374 = vmatpush.msra.mxu0 %v1345
    %1375 = vmatpush.msra.mxu0 %v1343
    %1376 = vmatpush.msra.mxu0 %v1341
    %1377 = vmatpush.msra.mxu0 %v1339
    %1378 = vmatpush.msra.mxu0 %v1337
    %1379 = vmatpush.msra.mxu0 %v1335
    %1380 = vmatmul.f32.gmra.mxu0 %v1359
    %v1381 = vpop.f32.mrf.mxu0
    %v1382 = vadd.f32 %v1354, %v1381
    %1383 = vmatmul.f32.gmra.mxu0 %v1362
    %v1384 = vpop.f32.mrf.mxu0
    %v1385 = vadd.f32 %v1354, %v1384
    %1386 = vdwg.mxu0
    %1387 = vmatpush.msra.mxu0 0.0
    %1388 = vmatpush.msra.mxu0 0.0
    %1389 = vmatpush.msra.mxu0 0.0
    %1390 = vmatpush.msra.mxu0 0.0
    %1391 = vmatpush.msra.mxu0 0.0
    %1392 = vmatpush.msra.mxu0 0.0
    %1393 = vmatpush.msra.mxu0 0.0
    %1394 = vmatpush.msra.mxu0 0.0
    %1395 = vmatpush.msra.mxu0 %v1350
    %1396 = vmatpush.msra.mxu0 %v1348
    %1397 = vmatpush.msra.mxu0 %v1346
    %1398 = vmatpush.msra.mxu0 %v1344
    %1399 = vmatpush.msra.mxu0 %v1342
    %1400 = vmatpush.msra.mxu0 %v1340
    %1401 = vmatpush.msra.mxu0 %v1338
    %1402 = vmatpush.msra.mxu0 %v1336
    %1403 = vmatmul.f32.gmra.mxu0 %v1359
    %v1404 = vpop.f32.mrf.mxu0
    %v1405 = vadd.f32 %v1355, %v1404
    %1406 = vmatmul.f32.gmra.mxu0 %v1362
    %v1407 = vpop.f32.mrf.mxu0
    %v1408 = vadd.f32 %v1355, %v1407
    %1409 = vdwg.mxu0
    %v1410 = vmul.f32 %v1382, 0.5
    %v1411 = vmul.f32 %v1405, 0.5
    %v1412 = vmul.f32 %v1385, 0.5
    %v1413 = vmul.f32 %v1408, 0.5
    %v1414 = vmul.f32 %v1382, 0.70710677
    %v1415 = vmul.f32 %v1405, 0.70710677
    %v1416 = vmul.f32 %v1385, 0.70710677
    %v1417 = vmul.f32 %v1408, 0.70710677
    %v1418 = vmul.f32 %v1414, %v1414
    %v1419 = vmin.f32 16.0, %v1418
    %v1420 = vmul.f32 %v1419, 2.1237322e-06
    %v1421 = vadd.f32 %v1420, 0.00028619796
    %v1422 = vmul.f32 %v1419, %v1421
    %v1423 = vadd.f32 %v1422, 0.0036580483
    %v1424 = vmul.f32 %v1419, %v1423
    %v1425 = vadd.f32 %v1424, 0.05243302
    %v1426 = vmul.f32 %v1419, %v1425
    %v1427 = vadd.f32 %v1426, 0.18741608
    %v1428 = vmul.f32 %v1419, %v1427
    %v1429 = vadd.f32 %v1428, 1.1283791
    %v1430 = vmul.f32 %v1414, %v1429
    %v1431 = vmul.f32 %v1419, 3.8918573e-05
    %v1432 = vadd.f32 %v1431, 0.001143296
    %v1433 = vmul.f32 %v1419, %v1432
    %v1434 = vadd.f32 %v1433, 0.014752088
    %v1435 = vmul.f32 %v1419, %v1434
    %v1436 = vadd.f32 %v1435, 0.112945676
    %v1437 = vmul.f32 %v1419, %v1436
    %v1438 = vadd.f32 %v1437, 0.4994258
    %v1439 = vmul.f32 %v1419, %v1438
    %v1440 = vadd.f32 %v1439, 1.0
    %v1441 = vrcp.pop %v1440
    %v1442 = vmul.f32 %v1440, %v1441
    %v1443 = vsub.f32 1.0, %v1442
    %v1444 = vmul.f32 %v1441, %v1443
    %v1445 = vadd.f32 %v1441, %v1444
    %vm1446 = vweird.f32 %v1440
    %vm1447 = vweird.f32 %v1441
    %vm1448 = vmor %vm1446, %vm1447
    %v1449 = vsel %vm1448, %v1441, %v1445
    %v1450 = vand.u32 2147483647, %v1440
    %vm1451 = vcmp.eq.f32.partialorder %v1450, 8.507059e+37
    %v1452 = vand.u32 %v1440, 2147483648
    %v1453 = vor.u32 1.1754944e-38, %v1452
    %v1454 = vsel %vm1451, %v1453, %v1449
    %v1455 = vmul.f32 %v1430, %v1454
    %v1456 = vmin.f32 %v1455, 1.0
    %v1457 = vmax.f32 %v1456, -1.0
    %v1458 = vmul.f32 %v1415, %v1415
    %v1459 = vmin.f32 16.0, %v1458
    %v1460 = vmul.f32 %v1459, 2.1237322e-06
    %v1461 = vadd.f32 %v1460, 0.00028619796
    %v1462 = vmul.f32 %v1459, %v1461
    %v1463 = vadd.f32 %v1462, 0.0036580483
    %v1464 = vmul.f32 %v1459, %v1463
    %v1465 = vadd.f32 %v1464, 0.05243302
    %v1466 = vmul.f32 %v1459, %v1465
    %v1467 = vadd.f32 %v1466, 0.18741608
    %v1468 = vmul.f32 %v1459, %v1467
    %v1469 = vadd.f32 %v1468, 1.1283791
    %v1470 = vmul.f32 %v1415, %v1469
    %v1471 = vmul.f32 %v1459, 3.8918573e-05
    %v1472 = vadd.f32 %v1471, 0.001143296
    %v1473 = vmul.f32 %v1459, %v1472
    %v1474 = vadd.f32 %v1473, 0.014752088
    %v1475 = vmul.f32 %v1459, %v1474
    %v1476 = vadd.f32 %v1475, 0.112945676
    %v1477 = vmul.f32 %v1459, %v1476
    %v1478 = vadd.f32 %v1477, 0.4994258
    %v1479 = vmul.f32 %v1459, %v1478
    %v1480 = vadd.f32 %v1479, 1.0
    %v1481 = vrcp.pop %v1480
    %v1482 = vmul.f32 %v1480, %v1481
    %v1483 = vsub.f32 1.0, %v1482
    %v1484 = vmul.f32 %v1481, %v1483
    %v1485 = vadd.f32 %v1481, %v1484
    %vm1486 = vweird.f32 %v1480
    %vm1487 = vweird.f32 %v1481
    %vm1488 = vmor %vm1486, %vm1487
    %v1489 = vsel %vm1488, %v1481, %v1485
    %v1490 = vand.u32 2147483647, %v1480
    %vm1491 = vcmp.eq.f32.partialorder %v1490, 8.507059e+37
    %v1492 = vand.u32 %v1480, 2147483648
    %v1493 = vor.u32 1.1754944e-38, %v1492
    %v1494 = vsel %vm1491, %v1493, %v1489
    %v1495 = vmul.f32 %v1470, %v1494
    %v1496 = vmin.f32 %v1495, 1.0
    %v1497 = vmax.f32 %v1496, -1.0
    %v1498 = vmul.f32 %v1416, %v1416
    %v1499 = vmin.f32 16.0, %v1498
    %v1500 = vmul.f32 %v1499, 2.1237322e-06
    %v1501 = vadd.f32 %v1500, 0.00028619796
    %v1502 = vmul.f32 %v1499, %v1501
    %v1503 = vadd.f32 %v1502, 0.0036580483
    %v1504 = vmul.f32 %v1499, %v1503
    %v1505 = vadd.f32 %v1504, 0.05243302
    %v1506 = vmul.f32 %v1499, %v1505
    %v1507 = vadd.f32 %v1506, 0.18741608
    %v1508 = vmul.f32 %v1499, %v1507
    %v1509 = vadd.f32 %v1508, 1.1283791
    %v1510 = vmul.f32 %v1416, %v1509
    %v1511 = vmul.f32 %v1499, 3.8918573e-05
    %v1512 = vadd.f32 %v1511, 0.001143296
    %v1513 = vmul.f32 %v1499, %v1512
    %v1514 = vadd.f32 %v1513, 0.014752088
    %v1515 = vmul.f32 %v1499, %v1514
    %v1516 = vadd.f32 %v1515, 0.112945676
    %v1517 = vmul.f32 %v1499, %v1516
    %v1518 = vadd.f32 %v1517, 0.4994258
    %v1519 = vmul.f32 %v1499, %v1518
    %v1520 = vadd.f32 %v1519, 1.0
    %v1521 = vrcp.pop %v1520
    %v1522 = vmul.f32 %v1520, %v1521
    %v1523 = vsub.f32 1.0, %v1522
    %v1524 = vmul.f32 %v1521, %v1523
    %v1525 = vadd.f32 %v1521, %v1524
    %vm1526 = vweird.f32 %v1520
    %vm1527 = vweird.f32 %v1521
    %vm1528 = vmor %vm1526, %vm1527
    %v1529 = vsel %vm1528, %v1521, %v1525
    %v1530 = vand.u32 2147483647, %v1520
    %vm1531 = vcmp.eq.f32.partialorder %v1530, 8.507059e+37
    %v1532 = vand.u32 %v1520, 2147483648
    %v1533 = vor.u32 1.1754944e-38, %v1532
    %v1534 = vsel %vm1531, %v1533, %v1529
    %v1535 = vmul.f32 %v1510, %v1534
    %v1536 = vmin.f32 %v1535, 1.0
    %v1537 = vmax.f32 %v1536, -1.0
    %v1538 = vmul.f32 %v1417, %v1417
    %v1539 = vmin.f32 16.0, %v1538
    %v1540 = vmul.f32 %v1539, 2.1237322e-06
    %v1541 = vadd.f32 %v1540, 0.00028619796
    %v1542 = vmul.f32 %v1539, %v1541
    %v1543 = vadd.f32 %v1542, 0.0036580483
    %v1544 = vmul.f32 %v1539, %v1543
    %v1545 = vadd.f32 %v1544, 0.05243302
    %v1546 = vmul.f32 %v1539, %v1545
    %v1547 = vadd.f32 %v1546, 0.18741608
    %v1548 = vmul.f32 %v1539, %v1547
    %v1549 = vadd.f32 %v1548, 1.1283791
    %v1550 = vmul.f32 %v1417, %v1549
    %v1551 = vmul.f32 %v1539, 3.8918573e-05
    %v1552 = vadd.f32 %v1551, 0.001143296
    %v1553 = vmul.f32 %v1539, %v1552
    %v1554 = vadd.f32 %v1553, 0.014752088
    %v1555 = vmul.f32 %v1539, %v1554
    %v1556 = vadd.f32 %v1555, 0.112945676
    %v1557 = vmul.f32 %v1539, %v1556
    %v1558 = vadd.f32 %v1557, 0.4994258
    %v1559 = vmul.f32 %v1539, %v1558
    %v1560 = vadd.f32 %v1559, 1.0
    %v1561 = vrcp.pop %v1560
    %v1562 = vmul.f32 %v1560, %v1561
    %v1563 = vsub.f32 1.0, %v1562
    %v1564 = vmul.f32 %v1561, %v1563
    %v1565 = vadd.f32 %v1561, %v1564
    %vm1566 = vweird.f32 %v1560
    %vm1567 = vweird.f32 %v1561
    %vm1568 = vmor %vm1566, %vm1567
    %v1569 = vsel %vm1568, %v1561, %v1565
    %v1570 = vand.u32 2147483647, %v1560
    %vm1571 = vcmp.eq.f32.partialorder %v1570, 8.507059e+37
    %v1572 = vand.u32 %v1560, 2147483648
    %v1573 = vor.u32 1.1754944e-38, %v1572
    %v1574 = vsel %vm1571, %v1573, %v1569
    %v1575 = vmul.f32 %v1550, %v1574
    %v1576 = vmin.f32 %v1575, 1.0
    %v1577 = vmax.f32 %v1576, -1.0
    %v1578 = vadd.f32 %v1457, 1.0
    %v1579 = vadd.f32 %v1497, 1.0
    %v1580 = vadd.f32 %v1537, 1.0
    %v1581 = vadd.f32 %v1577, 1.0
    %v1582 = vmul.f32 %v1410, %v1578
    %v1583 = vmul.f32 %v1411, %v1579
    %v1584 = vmul.f32 %v1412, %v1580
    %v1585 = vmul.f32 %v1413, %v1581
    %s1586 = scalar_lea.vmem %s15, 256
    %v1587 = vld [vmem:[%s1586] sm:$0xff]
    %v1588 = vld [vmem:[%s1586 + $0x8] sm:$0xff]
    %v1589 = vld [vmem:[%s1586 + $0x10] sm:$0xff]
    %v1590 = vld [vmem:[%s1586 + $0x18] sm:$0xff]
    %v1591 = vld [vmem:[%s1586 + $0x20] sm:$0xff]
    %v1592 = vld [vmem:[%s1586 + $0x28] sm:$0xff]
    %v1593 = vld [vmem:[%s1586 + $0x30] sm:$0xff]
    %v1594 = vld [vmem:[%s1586 + $0x38] sm:$0xff]
    %v1595 = vld [vmem:[%s1586 + $0x40] sm:$0xff]
    %v1596 = vld [vmem:[%s1586 + $0x48] sm:$0xff]
    %v1597 = vld [vmem:[%s1586 + $0x50] sm:$0xff]
    %v1598 = vld [vmem:[%s1586 + $0x58] sm:$0xff]
    %v1599 = vld [vmem:[%s1586 + $0x60] sm:$0xff]
    %v1600 = vld [vmem:[%s1586 + $0x68] sm:$0xff]
    %v1601 = vld [vmem:[%s1586 + $0x70] sm:$0xff]
    %v1602 = vld [vmem:[%s1586 + $0x78] sm:$0xff]
    %v1603 = vld [vmem:[%s1586 + $0x80] sm:$0xff]
    %v1604 = vld [vmem:[%s1586 + $0x88] sm:$0xff]
    %v1605 = vld [vmem:[%s1586 + $0x90] sm:$0xff]
    %v1606 = vld [vmem:[%s1586 + $0x98] sm:$0xff]
    %v1607 = vld [vmem:[%s1586 + $0xa0] sm:$0xff]
    %v1608 = vld [vmem:[%s1586 + $0xa8] sm:$0xff]
    %v1609 = vld [vmem:[%s1586 + $0xb0] sm:$0xff]
    %v1610 = vld [vmem:[%s1586 + $0xb8] sm:$0xff]
    %v1611 = vld [vmem:[%s1586 + $0xc0] sm:$0xff]
    %v1612 = vld [vmem:[%s1586 + $0xc8] sm:$0xff]
    %v1613 = vld [vmem:[%s1586 + $0xd0] sm:$0xff]
    %v1614 = vld [vmem:[%s1586 + $0xd8] sm:$0xff]
    %v1615 = vld [vmem:[%s1586 + $0xe0] sm:$0xff]
    %v1616 = vld [vmem:[%s1586 + $0xe8] sm:$0xff]
    %v1617 = vld [vmem:[%s1586 + $0xf0] sm:$0xff]
    %v1618 = vld [vmem:[%s1586 + $0xf8] sm:$0xff]
    %s1619 = scalar_lea.vmem %s16, 1
    %v1620 = vld [vmem:[%s1619] sm:$0x1]
    %v1622 = vperm.slane %v1620, 0
    %1624 = vmatpush.msra.mxu0 %v1602
    %1625 = vmatpush.msra.mxu0 %v1601
    %1626 = vmatpush.msra.mxu0 %v1600
    %1627 = vmatpush.msra.mxu0 %v1599
    %1628 = vmatpush.msra.mxu0 %v1598
    %1629 = vmatpush.msra.mxu0 %v1597
    %1630 = vmatpush.msra.mxu0 %v1596
    %1631 = vmatpush.msra.mxu0 %v1595
    %1632 = vmatpush.msra.mxu0 %v1594
    %1633 = vmatpush.msra.mxu0 %v1593
    %1634 = vmatpush.msra.mxu0 %v1592
    %1635 = vmatpush.msra.mxu0 %v1591
    %1636 = vmatpush.msra.mxu0 %v1590
    %1637 = vmatpush.msra.mxu0 %v1589
    %1638 = vmatpush.msra.mxu0 %v1588
    %1639 = vmatpush.msra.mxu0 %v1587
    %1640 = vmatmul.f32.gmra.mxu0 %v1582
    %v1641 = vpop.f32.mrf.mxu0
    %v1642 = vadd.f32 %v1622, %v1641
    %1643 = vmatmul.f32.gmra.mxu0 %v1584
    %v1644 = vpop.f32.mrf.mxu0
    %v1645 = vadd.f32 %v1622, %v1644
    %1646 = vdwg.mxu0
    %1647 = vmatpush.msra.mxu0 %v1618
    %1648 = vmatpush.msra.mxu0 %v1617
    %1649 = vmatpush.msra.mxu0 %v1616
    %1650 = vmatpush.msra.mxu0 %v1615
    %1651 = vmatpush.msra.mxu0 %v1614
    %1652 = vmatpush.msra.mxu0 %v1613
    %1653 = vmatpush.msra.mxu0 %v1612
    %1654 = vmatpush.msra.mxu0 %v1611
    %1655 = vmatpush.msra.mxu0 %v1610
    %1656 = vmatpush.msra.mxu0 %v1609
    %1657 = vmatpush.msra.mxu0 %v1608
    %1658 = vmatpush.msra.mxu0 %v1607
    %1659 = vmatpush.msra.mxu0 %v1606
    %1660 = vmatpush.msra.mxu0 %v1605
    %1661 = vmatpush.msra.mxu0 %v1604
    %1662 = vmatpush.msra.mxu0 %v1603
    %1663 = vmatmul.f32.gmra.mxu0 %v1583
    %v1664 = vpop.f32.mrf.mxu0
    %v1665 = vadd.f32 %v1642, %v1664
    %1666 = vmatmul.f32.gmra.mxu0 %v1585
    %v1667 = vpop.f32.mrf.mxu0
    %v1668 = vadd.f32 %v1645, %v1667
    %1669 = vdwg.mxu0
    %v1670 = vadd.f32 %v1665, %v1332
    %v1671 = vadd.f32 %v1668, %v1333
    %s1672 = scalar_lea.vmem %s17, 1
    %v1673 = vld [vmem:[%s1672] sm:$0x1]
    %s1674 = scalar_lea.vmem %s18, 1
    %v1675 = vld [vmem:[%s1674] sm:$0x1]
    %v1676 = vsel %vm95, %v1670, 0.0
    %1677 = vadd.xlane.f32.xlu0 %v1676
    %v1678 = vpop.xlane.xlu0 %1677
    %v1679 = vsel %vm95, %v1671, 0.0
    %1680 = vadd.xlane.f32.xlu0 %v1679
    %v1681 = vpop.xlane.xlu0 %1680
    %v1682 = vmul.f32 %v1678, %v139
    %v1683 = vmul.f32 %v1681, %v139
    %v1684 = vsub.f32 %v1670, %v1682
    %v1685 = vsub.f32 %v1671, %v1683
    %v1686 = vmul.f32 %v1684, %v1684
    %v1687 = vmul.f32 %v1685, %v1685
    %v1688 = vsel %vm95, %v1686, 0.0
    %1689 = vadd.xlane.f32.xlu0 %v1688
    %v1690 = vpop.xlane.xlu0 %1689
    %v1691 = vsel %vm95, %v1687, 0.0
    %1692 = vadd.xlane.f32.xlu0 %v1691
    %v1693 = vpop.xlane.xlu0 %1692
    %v1694 = vmul.f32 %v1690, %v139
    %v1695 = vmul.f32 %v1693, %v139
    %v1696 = vadd.f32 %v1694, 1e-12
    %v1697 = vadd.f32 %v1695, 1e-12
    %v1698 = vrsqrt.pop %v1696
    %v1699 = vmul.f32 %v1698, %v1696
    %v1700 = vmul.f32 %v1699, %v1698
    %v1701 = vmul.f32 0.5, %v1700
    %v1702 = vsub.f32 1.5, %v1701
    %v1703 = vmul.f32 %v1698, %v1702
    %vm1704 = vweird.f32 %v1696
    %vm1705 = vweird.f32 %v1698
    %vm1706 = vmor %vm1704, %vm1705
    %v1707 = vsel %vm1706, %v1698, %v1703
    %v1708 = vrsqrt.pop %v1697
    %v1709 = vmul.f32 %v1708, %v1697
    %v1710 = vmul.f32 %v1709, %v1708
    %v1711 = vmul.f32 0.5, %v1710
    %v1712 = vsub.f32 1.5, %v1711
    %v1713 = vmul.f32 %v1708, %v1712
    %vm1714 = vweird.f32 %v1697
    %vm1715 = vweird.f32 %v1708
    %vm1716 = vmor %vm1714, %vm1715
    %v1717 = vsel %vm1716, %v1708, %v1713
    %v1718 = vmul.f32 %v1684, %v1707
    %v1719 = vmul.f32 %v1685, %v1717
    %v1721 = vperm.slane %v1673, 0
    %v1723 = vmul.f32 %v1718, %v1721
    %v1724 = vmul.f32 %v1719, %v1721
    %v1726 = vperm.slane %v1675, 0
    %v1728 = vadd.f32 %v1723, %v1726
    %v1729 = vadd.f32 %v1724, %v1726
    %v1730 = vld [vmem:[%s19] sm:$0xff]
    %v1731 = vld [vmem:[%s19 + $0x8] sm:$0xff]
    %v1732 = vld [vmem:[%s19 + $0x10] sm:$0xff]
    %v1733 = vld [vmem:[%s19 + $0x18] sm:$0xff]
    %v1734 = vld [vmem:[%s19 + $0x20] sm:$0xff]
    %v1735 = vld [vmem:[%s19 + $0x28] sm:$0xff]
    %v1736 = vld [vmem:[%s19 + $0x30] sm:$0xff]
    %v1737 = vld [vmem:[%s19 + $0x38] sm:$0xff]
    %v1738 = vld [vmem:[%s20] sm:$0x1]
    %v1740 = vperm.slane %v1738, 0
    %v1743 = vsel %vm95, %v1728, 0
    %v1746 = vsel %vm95, %v1729, 0
    %1748 = vmatpush.msra.mxu0 0.0
    %1749 = vmatpush.msra.mxu0 0.0
    %1750 = vmatpush.msra.mxu0 0.0
    %1751 = vmatpush.msra.mxu0 0.0
    %1752 = vmatpush.msra.mxu0 0.0
    %1753 = vmatpush.msra.mxu0 0.0
    %1754 = vmatpush.msra.mxu0 0.0
    %1755 = vmatpush.msra.mxu0 0.0
    %1756 = vmatpush.msra.mxu0 %v1737
    %1757 = vmatpush.msra.mxu0 %v1736
    %1758 = vmatpush.msra.mxu0 %v1735
    %1759 = vmatpush.msra.mxu0 %v1734
    %1760 = vmatpush.msra.mxu0 %v1733
    %1761 = vmatpush.msra.mxu0 %v1732
    %1762 = vmatpush.msra.mxu0 %v1731
    %1763 = vmatpush.msra.mxu0 %v1730
    %1764 = vmatmul.f32.gmra.mxu0 %v1743
    %v1765 = vpop.f32.mrf.mxu0
    %v1766 = vadd.f32 %v1740, %v1765
    %1767 = vmatmul.f32.gmra.mxu0 %v1746
    %v1768 = vpop.f32.mrf.mxu0
    %v1769 = vadd.f32 %v1740, %v1768
    %1770 = vdwg.mxu0
    %v1771 = vlaneseq
    %v1772 = vshrl.u32 %v1771, 7
    %v1773 = vmul.u32 %v1772, 8
    %vm1774 = vcmp.eq.s32.totalorder %v72, %v1773
    %v1775 = vsel %vm1774, 1, 0
    %v1776 = vcvt.s32.f32 %v1775
    %v1778 = vsel %vm341, %v1776, 0
    %1780 = vmatpush.msra.mxu0 0.0
    %1781 = vmatpush.msra.mxu0 0.0
    %1782 = vmatpush.msra.mxu0 0.0
    %1783 = vmatpush.msra.mxu0 0.0
    %1784 = vmatpush.msra.mxu0 0.0
    %1785 = vmatpush.msra.mxu0 0.0
    %1786 = vmatpush.msra.mxu0 0.0
    %1787 = vmatpush.msra.mxu0 0.0
    %1788 = vmatpush.msra.mxu0 0.0
    %1789 = vmatpush.msra.mxu0 0.0
    %1790 = vmatpush.msra.mxu0 0.0
    %1791 = vmatpush.msra.mxu0 0.0
    %1792 = vmatpush.msra.mxu0 0.0
    %1793 = vmatpush.msra.mxu0 0.0
    %1794 = vmatpush.msra.mxu0 %v1769
    %1795 = vmatpush.msra.mxu0 %v1766
    %1796 = vmatmul.f32.gmra.mxu0 %v1778
    %v1797 = vpop.f32.mrf.mxu0
    %v1798 = vadd.f32 0.0, %v1797
    %1799 = vdwg.mxu0
    %1800 = vst [vmem:[#allocation2] sm:$0x3] %v1798
    // Predicated region
    $region86: #{multilabel_bert_forward.1} parent=1 // pred_check
      _
    $region87: #{multilabel_bert_forward.1} parent=1 // pred_check_branch
      %1802 = sbr.rel (0) target = $region89
    $region88: #{multilabel_bert_forward.1} parent=1 // pred_region
      %1804 = vsyncadd [#allocation3], 0
      %s1806 = sshll.u32 [#allocation2], 4
      %s1807 = int_to_ptr.vmem [resolvable:$true] %s1806
      %s1808 = sshll.u32 %s21, 4
      %s1809 = int_to_ptr.hbm [resolvable:$true] %s1808
      %1811 = dma.vmem_to_hbm [thread:$0]  %s1807, 32, %s1809, [#allocation3]
    $region89: #{multilabel_bert_forward.1} parent=1 // pred_fallthru
      _
    // Predicated region
    $region90: #{multilabel_bert_forward.1} parent=1 // pred_check
      _
    $region91: #{multilabel_bert_forward.1} parent=1 // pred_check_branch
      %1813 = sbr.rel (0) target = $region93
    $region92: #{multilabel_bert_forward.1} parent=1 // pred_region
      %1815 = dma.done [#allocation3], 32
    $region93: #{multilabel_bert_forward.1} parent=1 // pred_fallthru
      _
    %1816 = vsyncpa [#allocation3], 1

</llo_original>
